<compile_context>
chip_gen: v6e
topology: v6e:2x2x1
jax: 0.10.0
libtpu: 0.0.40
codegen_flags: <defaults>
</compile_context>

<pallas_src>
import functools
import math

import numpy as np
import jax
import jax.numpy as jnp
from jax.experimental import pallas as pl
from jax.experimental.pallas import tpu as pltpu


# ----------------------------------------------------------------------------
# small helpers
# ----------------------------------------------------------------------------
def _round_up(x, m):
    return (x + m - 1) // m * m


def _pick_tile(d, cap=1024):
    """Tile for a lane-dim (last-dim) axis: full extent if small (no padding),
    otherwise the largest 128-multiple divisor, otherwise 512 with padding."""
    if d <= cap:
        return d
    for t in (512, 384, 256, 128):
        if d % t == 0:
            return t
    return 512


def _pick_tm(m, cap=512):
    """Sublane (M) tile: prefer a divisor of M (no padding / no output slice)."""
    m8 = _round_up(m, 8)
    if m8 <= cap:
        return m8
    for t in range(cap, 0, -8):
        if m % t == 0:
            return t
    return cap


# ----------------------------------------------------------------------------
# Pallas kernel 1: tiled matmul with fused bias / residual / ReLU epilogue
# ----------------------------------------------------------------------------
def _make_mm_kernel(has_bias, has_res, act):
    def kernel(*refs):
        a_ref, b_ref = refs[0], refs[1]
        idx = 2
        bias_ref = None
        res_ref = None
        if has_bias:
            bias_ref = refs[idx]
            idx += 1
        if has_res:
            res_ref = refs[idx]
            idx += 1
        o_ref, acc_ref = refs[idx], refs[idx + 1]

        @pl.when(pl.program_id(2) == 0)
        def _():
            acc_ref[...] = jnp.zeros_like(acc_ref)

        acc_ref[...] += jnp.dot(a_ref[...], b_ref[...],
                                preferred_element_type=jnp.float32)

        # Write (+ epilogue) only on the final K step.
        @pl.when(pl.program_id(2) == pl.num_programs(2) - 1)
        def _():
            y = acc_ref[...]
            if has_bias:
                y = y + bias_ref[...]
            if has_res:
                y = y + res_ref[...]
            if act == 'relu':
                y = jnp.maximum(y, 0.0)
            o_ref[...] = y

    return kernel


@functools.partial(jax.jit, static_argnames=('act',))
def _mm(a, b, bias=None, residual=None, act=None):
    """act((a @ b) + bias + residual): bf16 MXU inputs, f32 accumulator."""
    M, K = a.shape
    K2, N = b.shape
    assert K == K2
    tm = _pick_tm(M)
    tk = _pick_tile(K)
    tn = _pick_tile(N)
    Mp, Kp, Np = _round_up(M, tm), _round_up(K, tk), _round_up(N, tn)

    a_p = a.astype(jnp.bfloat16)
    if (Mp, Kp) != (M, K):
        a_p = jnp.pad(a_p, ((0, Mp - M), (0, Kp - K)))
    b_p = b.astype(jnp.bfloat16)
    if (Kp, Np) != (K, N):
        b_p = jnp.pad(b_p, ((0, Kp - K), (0, Np - N)))

    operands = [a_p, b_p]
    in_specs = [pl.BlockSpec((tm, tk), lambda i, j, k: (i, k)),
                pl.BlockSpec((tk, tn), lambda i, j, k: (k, j))]
    if bias is not None:
        bb = bias.astype(jnp.float32).reshape(1, N)
        if Np != N:
            bb = jnp.pad(bb, ((0, 0), (0, Np - N)))
        operands.append(bb)
        in_specs.append(pl.BlockSpec((1, tn), lambda i, j, k: (0, j)))
    if residual is not None:
        rr = residual.astype(jnp.float32)
        if (Mp, Np) != (M, N):
            rr = jnp.pad(rr, ((0, Mp - M), (0, Np - N)))
        operands.append(rr)
        in_specs.append(pl.BlockSpec((tm, tn), lambda i, j, k: (i, j)))

    out = pl.pallas_call(
        _make_mm_kernel(bias is not None, residual is not None, act),
        out_shape=jax.ShapeDtypeStruct((Mp, Np), jnp.float32),
        grid_spec=pltpu.PrefetchScalarGridSpec(
            num_scalar_prefetch=0,
            grid=(Mp // tm, Np // tn, Kp // tk),
            in_specs=in_specs,
            out_specs=pl.BlockSpec((tm, tn), lambda i, j, k: (i, j)),
            scratch_shapes=[pltpu.VMEM((tm, tn), jnp.float32)]),
        compiler_params=pltpu.CompilerParams(
            dimension_semantics=("parallel", "parallel", "arbitrary")),
    )(*operands)
    if (Mp, Np) != (M, N):
        out = out[:M, :N]
    return out


# ----------------------------------------------------------------------------
# Pallas kernel 2: fused window attention
#   softmax(q k^T * scale + rel_bias + shift_mask) @ v  for a block of
#   (window, head) pairs, entirely in VMEM (no HBM attention matrix).
# ----------------------------------------------------------------------------
def _make_attn_kernel(scale):
    def kernel(q_ref, k_ref, v_ref, bm_ref, o_ref):
        q = q_ref[0]                                   # (Gb, N, hd) bf16
        k = k_ref[0]
        v = v_ref[0]
        s = jnp.einsum('gqd,gkd->gqk', q, k,
                       preferred_element_type=jnp.float32)
        s = s * scale + bm_ref[...]                    # bias + mask, f32
        s = s - jnp.max(s, axis=-1, keepdims=True)
        e = jnp.exp(s)
        # NOTE: plain divide (VPU) kept instead of pl.reciprocal(approx=True)
        # for interpreter compatibility; the denominator is tiny.
        p = e / jnp.sum(e, axis=-1, keepdims=True)
        o_ref[0] = jnp.einsum('gqk,gkd->gqd', p.astype(q.dtype), v,
                              preferred_element_type=jnp.float32)

    return kernel


@jax.jit
def _window_attention(q, k, v, bias_mask):
    """q, k, v: (B, G, N, hd) f32 (cast to bf16 inside); bias_mask: (G, N, N)."""
    B, G, N, hd = q.shape
    scale = 1.0 / math.sqrt(hd)
    Gb = next(c for c in (16, 12, 8, 6, 4, 3, 2, 1) if G % c == 0)
    qb, kb, vb = (t.astype(jnp.bfloat16) for t in (q, k, v))
    return pl.pallas_call(
        _make_attn_kernel(scale),
        out_shape=jax.ShapeDtypeStruct((B, G, N, hd), jnp.float32),
        grid_spec=pltpu.PrefetchScalarGridSpec(
            num_scalar_prefetch=0,
            grid=(B, G // Gb),
            in_specs=[pl.BlockSpec((1, Gb, N, hd), lambda b, g: (b, g, 0, 0)),
                      pl.BlockSpec((1, Gb, N, hd), lambda b, g: (b, g, 0, 0)),
                      pl.BlockSpec((1, Gb, N, hd), lambda b, g: (b, g, 0, 0)),
                      pl.BlockSpec((Gb, N, N), lambda b, g: (g, 0, 0))],
            out_specs=pl.BlockSpec((1, Gb, N, hd), lambda b, g: (b, g, 0, 0))),
        compiler_params=pltpu.CompilerParams(
            dimension_semantics=("parallel", "parallel")),
    )(qb, kb, vb, bias_mask)


# ----------------------------------------------------------------------------
# plain-JAX glue layers
# ----------------------------------------------------------------------------
def layer_norm(x, p, eps=1e-5):
    mu = jnp.mean(x, axis=-1, keepdims=True)
    var = jnp.mean(jnp.square(x - mu), axis=-1, keepdims=True)
    return (x - mu) / jnp.sqrt(var + eps) * p['g'] + p['b']


def _resize_bilinear(x, size):
    # NHWC, matches F.interpolate(mode='bilinear', align_corners=False) upscale
    return jax.image.resize(x, (x.shape[0], size[0], size[1], x.shape[3]),
                            method='bilinear')


def adaptive_avg_pool(x, s):
    B, H, W, C = x.shape
    rows = []
    for i in range(s):
        h0, h1 = (i * H) // s, -((-(i + 1) * H) // s)
        cols = []
        for j in range(s):
            w0, w1 = (j * W) // s, -((-(j + 1) * W) // s)
            cols.append(jnp.mean(x[:, h0:h1, w0:w1, :], axis=(1, 2)))
        rows.append(jnp.stack(cols, axis=1))
    return jnp.stack(rows, axis=1)                    # (B, s, s, C)


# ----------------------------------------------------------------------------
# Convolutions (NHWC) on top of the fused matmul kernel
# ----------------------------------------------------------------------------
def _fold_bn(conv_p, bn_p, eps=1e-5):
    # inference BN folded into the conv weight + bias
    w = conv_p['w']                                    # (O, I, kh, kw)
    scale = bn_p['g'] / jnp.sqrt(bn_p['rv'] + eps)
    bias = bn_p['b'] - bn_p['rm'] * scale
    return w * scale[:, None, None, None], bias


def conv1x1(x, w, b, act=None):
    B, H, W, I = x.shape
    O = w.shape[0]
    y = _mm(x.reshape(B * H * W, I), w[:, :, 0, 0].T, b, act=act)
    return y.reshape(B, H, W, O)


def conv3x3(x, w, b, act=None):
    """3x3 / stride-1 / pad-1 conv as 3 row-shifted K=3*C matmuls accumulated
    through the kernel's fused residual input (no 9x im2col tensor)."""
    B, H, W, I = x.shape
    O = w.shape[0]
    xp = jnp.pad(x.astype(jnp.bfloat16), ((0, 0), (1, 1), (1, 1), (0, 0)))
    y = None
    for dy in range(3):
        a = jnp.concatenate([xp[:, dy:dy + H, dx:dx + W, :] for dx in range(3)],
                            axis=-1).reshape(B * H * W, 3 * I)
        wk = jnp.concatenate([w[:, :, dy, dx].T for dx in range(3)], axis=0)
        last = dy == 2
        y = _mm(a, wk, b if last else None, residual=y,
                act=act if last else None)
    # TODO(synk): a manual-DMA kernel streaming shifted windows from HBM would
    # also remove this 3x row-slab materialization for production sizes.
    return y.reshape(B, H, W, O)


def conv_module(x, p, ksize):
    # mmcv ConvModule: conv(bias=False) -> BN -> ReLU, with BN folded.
    w, b = _fold_bn(p['conv'], p['bn'])
    if ksize == 1:
        return conv1x1(x, w, b, act='relu')
    return conv3x3(x, w, b, act='relu')


# ----------------------------------------------------------------------------
# Swin Transformer backbone
# ----------------------------------------------------------------------------
WINDOW = 7
DEPTHS = (2, 2, 6, 2)
HEADS = (3, 6, 12, 24)


def _rel_pos_index(ws):
    coords = np.stack(np.meshgrid(np.arange(ws), np.arange(ws), indexing='ij'))
    cf = coords.reshape(2, -1)
    rel = (cf[:, :, None] - cf[:, None, :]).transpose(1, 2, 0).astype(np.int64)
    rel[:, :, 0] += ws - 1
    rel[:, :, 1] += ws - 1
    rel[:, :, 0] *= 2 * ws - 1
    return jnp.asarray(rel.sum(-1))                    # (ws*ws, ws*ws)


def _attn_mask(H, W, ws, shift):
    img_mask = np.zeros((H, W), dtype=np.int32)
    cnt = 0
    for h in (slice(0, H - ws), slice(H - ws, H - shift), slice(H - shift, H)):
        for w in (slice(0, W - ws), slice(W - ws, W - shift), slice(W - shift, W)):
            img_mask[h, w] = cnt
            cnt += 1
    m = img_mask.reshape(H // ws, ws, W // ws, ws).transpose(0, 2, 1, 3)
    m = m.reshape(-1, ws * ws)
    diff = m[:, None, :] - m[:, :, None]
    return jnp.asarray(np.where(diff != 0, -100.0, 0.0).astype(np.float32))


def window_reverse(wins, ws, H, W, B):
    x = wins.reshape(B, H // ws, W // ws, ws, ws, -1)
    return x.transpose(0, 1, 3, 2, 4, 5).reshape(B, H, W, -1)


def shift_window_attention(x, hw, p, num_heads, ws, shift, rel_bias_dense):
    """(Shifted-)window MSA up to (but not including) the output projection."""
    B, L, C = x.shape
    H, W = hw
    hd = C // num_heads
    N = ws * ws
    nWh, nWw = H // ws, W // ws
    nW = nWh * nWw

    xi = x.reshape(B, H, W, C)
    if shift > 0:
        xi = jnp.roll(xi, shift=(-shift, -shift), axis=(1, 2))
    wins = xi.reshape(B, nWh, ws, nWw, ws, C).transpose(0, 1, 3, 2, 4, 5)
    wins = wins.reshape(B * nW * N, C)

    qkv = _mm(wins, p['qkv']['w'], p['qkv']['b'])                 # fused bias
    qkv = qkv.reshape(B, nW, N, 3, num_heads, hd).transpose(3, 0, 1, 4, 2, 5)
    q = qkv[0].reshape(B, nW * num_heads, N, hd)
    k = qkv[1].reshape(B, nW * num_heads, N, hd)
    v = qkv[2].reshape(B, nW * num_heads, N, hd)

    if shift > 0:
        mask = _attn_mask(H, W, ws, shift)                        # (nW, N, N)
        bm = rel_bias_dense[None, :, :, :] + mask[:, None, :, :]
    else:
        bm = jnp.broadcast_to(rel_bias_dense[None],
                              (nW, num_heads, N, N))
    bm = bm.reshape(nW * num_heads, N, N).astype(jnp.float32)

    out = _window_attention(q, k, v, bm)                          # (B, G, N, hd)
    out = out.reshape(B, nW, num_heads, N, hd).transpose(0, 1, 3, 2, 4)
    out = out.reshape(B * nW, N, C)
    xo = window_reverse(out, ws, H, W, B)
    if shift > 0:
        xo = jnp.roll(xo, shift=(shift, shift), axis=(1, 2))
    return xo.reshape(B, L, C)


def swin_block(x, hw, p, num_heads, ws, shift, rel_bias_dense):
    B, L, C = x.shape
    y = layer_norm(x, p['norm1'])
    y = shift_window_attention(y, hw, p['attn'], num_heads, ws, shift,
                               rel_bias_dense)
    # output projection with the (DropPath==identity) residual fused in
    x = _mm(y.reshape(B * L, C), p['attn']['proj']['w'], p['attn']['proj']['b'],
            residual=x.reshape(B * L, C)).reshape(B, L, C)
    y = layer_norm(x, p['norm2'])
    h = _mm(y.reshape(B * L, C), p['fc1']['w'], p['fc1']['b'])
    # TODO(synk): exact (erf) GELU kept outside the kernel; Mosaic erf support
    # is not guaranteed, so only bias / residual / ReLU are fused in epilogues.
    h = jax.nn.gelu(h, approximate=False)
    x = _mm(h, p['fc2']['w'], p['fc2']['b'],
            residual=x.reshape(B * L, C)).reshape(B, L, C)
    return x


def patch_merging(x, hw, p):
    B, L, C = x.shape
    H, W = hw
    xi = x.reshape(B, H, W, C)
    xi = jnp.stack([xi[:, 0::2, 0::2], xi[:, 0::2, 1::2],
                    xi[:, 1::2, 0::2], xi[:, 1::2, 1::2]], axis=-1)
    xi = xi.reshape(B, (H // 2) * (W // 2), 4 * C)
    xi = layer_norm(xi, p['norm'])
    xi = _mm(xi.reshape(-1, 4 * C), p['reduction']['w'])
    return xi.reshape(B, (H // 2) * (W // 2), 2 * C), (H // 2, W // 2)


def swin_backbone(img, params):
    B, Cin, H, W = img.shape
    pe = params['patch_embed']
    # 4x4 stride-4 patch-embed conv == matmul over non-overlapping patches.
    x = img.reshape(B, Cin, H // 4, 4, W // 4, 4).transpose(0, 2, 4, 1, 3, 5)
    x = x.reshape(B * (H // 4) * (W // 4), Cin * 16)
    w = pe['proj']['w'].reshape(pe['proj']['w'].shape[0], -1).T
    x = _mm(x, w, pe['proj']['b'])
    C = x.shape[-1]
    x = x.reshape(B, (H // 4) * (W // 4), C)
    x = layer_norm(x, pe['norm'])
    hw = (H // 4, W // 4)

    rel_index = _rel_pos_index(WINDOW)
    outs = []
    for i, stage in enumerate(params['stages']):
        nh = HEADS[i]
        for bi, blk in enumerate(stage['blocks']):
            shift = 0 if bi % 2 == 0 else WINDOW // 2
            # dense (nH, 49, 49) relative-position bias, built once per block
            rb = blk['attn']['rel_bias'][rel_index.reshape(-1)]
            rb = rb.reshape(WINDOW * WINDOW, WINDOW * WINDOW, nh).transpose(2, 0, 1)
            x = swin_block(x, hw, blk, nh, WINDOW, shift, rb)
        out = layer_norm(x, params['out_norms'][i])
        outs.append(out.reshape(out.shape[0], hw[0], hw[1], -1))   # NHWC
        if stage['downsample'] is not None:
            x, hw = patch_merging(x, hw, stage['downsample'])
    return outs


# ----------------------------------------------------------------------------
# UPerHead decoder (NHWC internally)
# ----------------------------------------------------------------------------
def uper_head(feats, p, pool_scales=(1, 2, 3, 6)):
    x3 = feats[3]
    size3 = x3.shape[1:3]
    psp_outs = [x3]
    for i, s in enumerate(pool_scales):
        y = adaptive_avg_pool(x3, s)
        y = conv_module(y, p['ppm'][i], 1)
        psp_outs.append(_resize_bilinear(y, size3))
    psp = conv_module(jnp.concatenate(psp_outs, axis=-1), p['bottleneck'], 3)

    laterals = [conv_module(feats[i], p['lateral'][i], 1) for i in range(3)]
    laterals.append(psp)
    for i in range(3, 0, -1):
        prev = laterals[i - 1].shape[1:3]
        laterals[i - 1] = laterals[i - 1] + _resize_bilinear(laterals[i], prev)

    fpn_outs = [conv_module(laterals[i], p['fpn'][i], 3) for i in range(3)]
    fpn_outs.append(laterals[3])
    size0 = fpn_outs[0].shape[1:3]
    for i in range(1, 4):
        fpn_outs[i] = _resize_bilinear(fpn_outs[i], size0)
    out = conv_module(jnp.concatenate(fpn_outs, axis=-1), p['fpn_bottleneck'], 3)
    # Dropout(p=0.1) before cls_seg is train-time stochastic -> identity here.
    out = conv1x1(out, p['cls']['w'], p['cls']['b'], act=None)
    return out


def swin_upernet_forward(img, params):
    feats = swin_backbone(img, params)
    out = uper_head(feats, params['decoder'])               # (B, 56, 56, nc)
    # F.interpolate(out, size=224): PyTorch default mode is 'nearest'; with an
    # exact 4x factor, nearest == repeat.  (mmseg configs usually use bilinear
    # here; the module as written uses the nearest default.)
    fh = 224 // out.shape[1]
    fw = 224 // out.shape[2]
    out = jnp.repeat(jnp.repeat(out, fh, axis=1), fw, axis=2)
    return out.transpose(0, 3, 1, 2)                         # NCHW


# ----------------------------------------------------------------------------
# Deterministic (synthetic) parameter initialization
# ----------------------------------------------------------------------------
class KeyGen:
    def __init__(self, key):
        self.key = key

    def __call__(self):
        self.key, k = jax.random.split(self.key)
        return k


def _dense(kg, din, dout, bias=True, std=0.02):
    return {'w': jax.random.normal(kg(), (din, dout), jnp.float32) * std,
            'b': jnp.zeros((dout,), jnp.float32) if bias else None}


def _ln(d):
    return {'g': jnp.ones((d,), jnp.float32), 'b': jnp.zeros((d,), jnp.float32)}


def _bn(d):
    return {'g': jnp.ones((d,), jnp.float32), 'b': jnp.zeros((d,), jnp.float32),
            'rm': jnp.zeros((d,), jnp.float32), 'rv': jnp.ones((d,), jnp.float32)}


def _conv(kg, cin, cout, k, bias=True, std=0.02):
    return {'w': jax.random.normal(kg(), (cout, cin, k, k), jnp.float32) * std,
            'b': jnp.zeros((cout,), jnp.float32) if bias else None}


def _conv_module(kg, cin, cout, k):
    return {'conv': _conv(kg, cin, cout, k, bias=False), 'bn': _bn(cout)}


def init_params(key, num_classes=21, embed=48, channels=64):
    # NOTE: synthetic weights (the reference loads a pretrained checkpoint).
    kg = KeyGen(key)
    dims = [embed * (2 ** i) for i in range(len(DEPTHS))]
    params = {'patch_embed': {'proj': _conv(kg, 3, embed, 4, bias=True),
                              'norm': _ln(embed)}}
    stages = []
    for i, (depth, nh) in enumerate(zip(DEPTHS, HEADS)):
        C = dims[i]
        blocks = []
        for _ in range(depth):
            blocks.append({
                'norm1': _ln(C),
                'attn': {'qkv': _dense(kg, C, 3 * C),
                         'proj': _dense(kg, C, C),
                         'rel_bias': jax.random.normal(
                             kg(), ((2 * WINDOW - 1) ** 2, nh),
                             jnp.float32) * 0.02},
                'norm2': _ln(C),
                'fc1': _dense(kg, C, 4 * C),
                'fc2': _dense(kg, 4 * C, C),
            })
        down = None
        if i < len(DEPTHS) - 1:
            down = {'norm': _ln(4 * C),
                    'reduction': _dense(kg, 4 * C, 2 * C, bias=False)}
        stages.append({'blocks': blocks, 'downsample': down})
    params['stages'] = stages
    params['out_norms'] = [_ln(c) for c in dims]

    ch = channels
    dec = {'ppm': [_conv_module(kg, dims[-1], ch, 1) for _ in range(4)],
           'bottleneck': _conv_module(kg, dims[-1] + 4 * ch, ch, 3),
           'lateral': [_conv_module(kg, c, ch, 1) for c in dims[:-1]],
           'fpn': [_conv_module(kg, ch, ch, 3) for _ in range(3)],
           'fpn_bottleneck': _conv_module(kg, 4 * ch, ch, 3),
           'cls': _conv(kg, ch, num_classes, 1, bias=True)}
    params['decoder'] = dec
    return params


# ----------------------------------------------------------------------------
if __name__ == "__main__":
    key = jax.random.PRNGKey(0)
    pkey, ikey = jax.random.split(key)
    # SMALL instantiation: the 224x224 / window-7 / 4-stage geometry of the
    # reference is kept (the forward hard-codes interpolate(size=224)), but
    # channel widths are scaled down (embed 48, decoder 64) so the script
    # compiles and runs quickly.
    params = init_params(pkey, num_classes=21, embed=48, channels=64)
    img = jax.random.normal(ikey, (1, 3, 224, 224), jnp.float32)

    out = swin_upernet_forward(img, params)
    out = jax.block_until_ready(out)

    assert out.shape == (1, 21, 224, 224), out.shape
    assert bool(jnp.all(jnp.isfinite(out)))
    print("KERNEL_OK")
</pallas_src>

<mosaic_0001>
module attributes {stable_mosaic.version = 11 : i64} {
  func.func @kernel(%arg0: i32, %arg1: i32, %arg2: i32, %arg3: memref<448x48xbf16, #tpu.memory_space<vmem>>, %arg4: memref<48x48xbf16, #tpu.memory_space<vmem>>, %arg5: memref<1x48xf32, #tpu.memory_space<vmem>>, %arg6: memref<448x48xf32, #tpu.memory_space<vmem>>, %arg7: memref<448x48xf32, #tpu.memory_space<vmem>>) attributes {dimension_semantics = [#tpu.dimension_semantics<parallel>, #tpu.dimension_semantics<parallel>, #tpu.dimension_semantics<arbitrary>], iteration_bounds = array<i64: 7, 1, 1>, scalar_prefetch = 0 : i64, scratch_operands = 1 : i64, tpu.core_type = #tpu.core_type<tc>, window_params = [{transform_indices = @transform_0, window_bounds = array<i64: 448, 48>}, {transform_indices = @transform_1, window_bounds = array<i64: 48, 48>}, {transform_indices = @transform_2, window_bounds = array<i64: 1, 48>}, {transform_indices = @transform_3, window_bounds = array<i64: 448, 48>}]} {
    %c0_i32 = arith.constant 0 : i32
    %0 = arith.cmpi eq, %arg2, %c0_i32 : i32
    %1 = arith.extui %0 : i1 to i32
    %c0_i32_0 = arith.constant 0 : i32
    %2 = arith.cmpi ne, %1, %c0_i32_0 : i32
    scf.if %2 {
      %cst_10 = arith.constant 0.000000e+00 : f32
      %12 = vector.broadcast %cst_10 : f32 to vector<448x48xf32>
      %c0_11 = arith.constant 0 : index
      %c0_12 = arith.constant 0 : index
      %13 = vector.load %arg7[%c0_11, %c0_12] : memref<448x48xf32, #tpu.memory_space<vmem>>, vector<448x48xf32>
      tpu.vector_store %arg7[%c0_11, %c0_12], %12 {strides = array<i32>} : memref<448x48xf32, #tpu.memory_space<vmem>>, vector<448x48xf32>,
    } else {
    }
    %c0 = arith.constant 0 : index
    %c0_1 = arith.constant 0 : index
    %3 = vector.load %arg7[%c0, %c0_1] : memref<448x48xf32, #tpu.memory_space<vmem>>, vector<448x48xf32>
    %c0_2 = arith.constant 0 : index
    %c0_3 = arith.constant 0 : index
    %4 = vector.load %arg3[%c0_2, %c0_3] : memref<448x48xbf16, #tpu.memory_space<vmem>>, vector<448x48xbf16>
    %c0_4 = arith.constant 0 : index
    %c0_5 = arith.constant 0 : index
    %5 = vector.load %arg4[%c0_4, %c0_5] : memref<48x48xbf16, #tpu.memory_space<vmem>>, vector<48x48xbf16>
    %cst = arith.constant dense<0.000000e+00> : vector<448x48xf32>
    %6 = tpu.matmul %4, %5, %cst {dimension_numbers = #tpu.dot_dimension_numbers<[1], [0], [0], [1], [0, 0, 1, 1], [], []>} : vector<448x48xbf16>, vector<48x48xbf16>, vector<448x48xf32> -> vector<448x48xf32>
    %7 = arith.addf %3, %6 : vector<448x48xf32>
    %c0_6 = arith.constant 0 : index
    %c0_7 = arith.constant 0 : index
    %8 = vector.load %arg7[%c0_6, %c0_7] : memref<448x48xf32, #tpu.memory_space<vmem>>, vector<448x48xf32>
    tpu.vector_store %arg7[%c0_6, %c0_7], %7 {strides = array<i32>} : memref<448x48xf32, #tpu.memory_space<vmem>>, vector<448x48xf32>,
    %c0_i32_8 = arith.constant 0 : i32
    %9 = arith.cmpi eq, %arg2, %c0_i32_8 : i32
    %10 = arith.extui %9 : i1 to i32
    %c0_i32_9 = arith.constant 0 : i32
    %11 = arith.cmpi ne, %10, %c0_i32_9 : i32
    scf.if %11 {
      %c0_10 = arith.constant 0 : index
      %c0_11 = arith.constant 0 : index
      %12 = vector.load %arg7[%c0_10, %c0_11] : memref<448x48xf32, #tpu.memory_space<vmem>>, vector<448x48xf32>
      %c0_12 = arith.constant 0 : index
      %c0_13 = arith.constant 0 : index
      %13 = vector.load %arg5[%c0_12, %c0_13] : memref<1x48xf32, #tpu.memory_space<vmem>>, vector<1x48xf32>
      %14 = vector.broadcast %13 : vector<1x48xf32> to vector<448x48xf32>
      %15 = arith.addf %12, %14 : vector<448x48xf32>
      %c0_14 = arith.constant 0 : index
      %c0_15 = arith.constant 0 : index
      %16 = vector.load %arg6[%c0_14, %c0_15] : memref<448x48xf32, #tpu.memory_space<vmem>>, vector<448x48xf32>
      tpu.vector_store %arg6[%c0_14, %c0_15], %15 {strides = array<i32>} : memref<448x48xf32, #tpu.memory_space<vmem>>, vector<448x48xf32>,
    } else {
    }
    return
  }
  func.func @transform_0(%arg0: i32, %arg1: i32, %arg2: i32) -> (i32, i32) {
    %c0_i32 = arith.constant 0 : i32
    return %arg0, %arg2 : i32, i32
  }
  func.func @transform_1(%arg0: i32, %arg1: i32, %arg2: i32) -> (i32, i32) {
    %c0_i32 = arith.constant 0 : i32
    return %arg2, %arg1 : i32, i32
  }
  func.func @transform_2(%arg0: i32, %arg1: i32, %arg2: i32) -> (i32, i32) {
    %c0_i32 = arith.constant 0 : i32
    %c0_i32_0 = arith.constant 0 : i32
    return %c0_i32, %arg1 : i32, i32
  }
  func.func @transform_3(%arg0: i32, %arg1: i32, %arg2: i32) -> (i32, i32) {
    %c0_i32 = arith.constant 0 : i32
    return %arg0, %arg1 : i32, i32
  }
}

</mosaic_0001>

<llo_original>
// kernel: _mm.1
$region0: #{_mm.1}
  #allocation0 [shape = 'u32[]', space=smem, size = 0x4, offset = 0x4, fixed_abs, tag = 'smem constant byte address 0x4 - core index']
  #allocation1 [shape = 'u32[144,128]{1,0:T(1,128)}', space=vmem, size = 0x12000, scoped, tag = 'internal scratch']
  #allocation2 [shape = 'f32[448,48]{1,0:T(8,128)}', space=vmem, size = 0x38000, scoped, tag = 'scratch operand']
  %s0 = inlined_call_operand.vmem [shape: bf16[3136,48], index: 0, kind: input, shape index: {}]
  %s1 = inlined_call_operand.vmem [shape: bf16[48,48], index: 1, kind: input, shape index: {}]
  %s2 = inlined_call_operand.vmem [shape: f32[1,48], index: 2, kind: input, shape index: {}]
  %s3 = inlined_call_operand.vmem [shape: f32[3136,48], index: 3, kind: output, shape index: {}]
  %s4 = sld [smem:[#allocation0]]
  $region53: #{_mm.1} parent=0
    _
  %s6 = ssub.s32 1, %s4
  %s7 = scalar_select 0, %s6, %s4
  loop: start=0, step=1, limit=9
  $region2: #{_mm.1} parent=0 // loop_pre_header
    _
  $region3: #{_mm.1} parent=0 // loop_header
    %s9 = sphi 0, %s13
    %p10 = scmp.ge.s32.totalorder %s9, 9
    %s16 = sphi 0, %s35
    %s17 = sphi 0, %s31
    %s18 = sphi 0, %s27
    %s19 = sphi 0, %s16
    %s20 = sphi 0, %s17
    %s21 = sphi 0, %s18
    %s22 = sphi 0, %s19
    %s23 = sphi 0, %s20
    %s24 = sphi 0, %s21
    %s40 = sphi 0, %s42
    %s43 = sphi 0, %s40
    %s44 = sphi 0, %s43
    %s60 = sphi 0, %s44
    %s68 = sphi 0, %s70
    %s71 = sphi 0, %s68
    %s72 = sphi 0, %s71
    %s88 = sphi 0, %s72
    %s94 = sphi 0, %s96
    %s97 = sphi 0, %s94
    %s98 = sphi 0, %s97
    %s114 = sphi 0, %s98
    %s122 = sphi 0, %s124
    %s125 = sphi 0, %s122
    %s126 = sphi 0, %s125
    %s142 = sphi 0, %s126
  $region4: #{_mm.1} parent=0 // loop_header_branch
    %12 = sbr.rel (%p10) target = $region8
  $region5: #{_mm.1} parent=0 // loop_body
    %s14 = ssub.s32 %s9, 1
    %s15 = ssub.s32 %s9, 2
    %s25 = sadd.s32 1, %s18
    %p26 = scmp.ge.s32.totalorder %s25, 1
    %s27 = scalar_select %p26, 0, %s25
    %s28 = sadd.s32 1, %s17
    %s29 = scalar_select %p26, %s28, %s17
    %p30 = scmp.ge.s32.totalorder %s29, 1
    %s31 = scalar_select %p30, 0, %s29
    %s32 = sadd.s32 1, %s16
    %s33 = scalar_select %p30, %s32, %s16
    %p34 = scmp.ge.s32.totalorder %s33, 7
    %s35 = scalar_select %p34, 0, %s33
    %s36 = ssub.s32 %s16, %s35
    %s37 = ssub.s32 %s18, %s27
    %s38 = sor.u32 %s36, %s37
    %p39 = scmp.eq.s32.totalorder %s38, 0
    %s41 = sadd.s32 %s40, 1
    %s42 = scalar_select %p39, %s40, %s41
    %p45 = pneg %p39
    %p46 = scmp.eq.s32.totalorder %s9, 6
    %p47 = por %p45, %p46
    %p48 = scmp.ne.s32.totalorder %s40, %s43
    %p49 = scmp.eq.s32.totalorder %s9, 0
    %p50 = por %p48, %p49
    %p51 = scmp.ne.s32.totalorder %s40, %s43
    %p52 = scmp.eq.s32.totalorder %s14, 6
    %p53 = por %p51, %p52
    %p54 = scmp.ne.s32.totalorder %s43, %s44
    %p55 = scmp.eq.s32.totalorder %s14, 0
    %p56 = por %p54, %p55
    %p57 = scmp.ne.s32.totalorder %s43, %s44
    %p58 = scmp.eq.s32.totalorder %s15, 6
    %p59 = por %p57, %p58
    %p61 = scmp.ne.s32.totalorder %s44, %s60
    %p62 = scmp.eq.s32.totalorder %s15, 0
    %p63 = por %p61, %p62
    %s64 = ssub.s32 %s18, %s27
    %s65 = ssub.s32 %s17, %s31
    %s66 = sor.u32 %s64, %s65
    %p67 = scmp.eq.s32.totalorder %s66, 0
    %s69 = sadd.s32 %s68, 1
    %s70 = scalar_select %p67, %s68, %s69
    %p73 = pneg %p67
    %p74 = scmp.eq.s32.totalorder %s9, 6
    %p75 = por %p73, %p74
    %p76 = scmp.ne.s32.totalorder %s68, %s71
    %p77 = scmp.eq.s32.totalorder %s9, 0
    %p78 = por %p76, %p77
    %p79 = scmp.ne.s32.totalorder %s68, %s71
    %p80 = scmp.eq.s32.totalorder %s14, 6
    %p81 = por %p79, %p80
    %p82 = scmp.ne.s32.totalorder %s71, %s72
    %p83 = scmp.eq.s32.totalorder %s14, 0
    %p84 = por %p82, %p83
    %p85 = scmp.ne.s32.totalorder %s71, %s72
    %p86 = scmp.eq.s32.totalorder %s15, 6
    %p87 = por %p85, %p86
    %p89 = scmp.ne.s32.totalorder %s72, %s88
    %p90 = scmp.eq.s32.totalorder %s15, 0
    %p91 = por %p89, %p90
    %s92 = ssub.s32 %s17, %s31
    %p93 = scmp.eq.s32.totalorder %s92, 0
    %s95 = sadd.s32 %s94, 1
    %s96 = scalar_select %p93, %s94, %s95
    %p99 = pneg %p93
    %p100 = scmp.eq.s32.totalorder %s9, 6
    %p101 = por %p99, %p100
    %p102 = scmp.ne.s32.totalorder %s94, %s97
    %p103 = scmp.eq.s32.totalorder %s9, 0
    %p104 = por %p102, %p103
    %p105 = scmp.ne.s32.totalorder %s94, %s97
    %p106 = scmp.eq.s32.totalorder %s14, 6
    %p107 = por %p105, %p106
    %p108 = scmp.ne.s32.totalorder %s97, %s98
    %p109 = scmp.eq.s32.totalorder %s14, 0
    %p110 = por %p108, %p109
    %p111 = scmp.ne.s32.totalorder %s97, %s98
    %p112 = scmp.eq.s32.totalorder %s15, 6
    %p113 = por %p111, %p112
    %p115 = scmp.ne.s32.totalorder %s98, %s114
    %p116 = scmp.eq.s32.totalorder %s15, 0
    %p117 = por %p115, %p116
    %s118 = ssub.s32 %s16, %s35
    %s119 = ssub.s32 %s17, %s31
    %s120 = sor.u32 %s118, %s119
    %p121 = scmp.eq.s32.totalorder %s120, 0
    %s123 = sadd.s32 %s122, 1
    %s124 = scalar_select %p121, %s122, %s123
    %p127 = pneg %p121
    %p128 = scmp.eq.s32.totalorder %s9, 6
    %p129 = por %p127, %p128
    %p130 = scmp.ne.s32.totalorder %s122, %s125
    %p131 = scmp.eq.s32.totalorder %s9, 0
    %p132 = por %p130, %p131
    %p133 = scmp.ne.s32.totalorder %s122, %s125
    %p134 = scmp.eq.s32.totalorder %s14, 6
    %p135 = por %p133, %p134
    %p136 = scmp.ne.s32.totalorder %s125, %s126
    %p137 = scmp.eq.s32.totalorder %s14, 0
    %p138 = por %p136, %p137
    %p139 = scmp.ne.s32.totalorder %s125, %s126
    %p140 = scmp.eq.s32.totalorder %s15, 6
    %p141 = por %p139, %p140
    %p143 = scmp.ne.s32.totalorder %s126, %s142
    %p144 = scmp.eq.s32.totalorder %s15, 0
    %p145 = por %p143, %p144
    %p146 = scmp.le.s32.totalorder 1, %s9
    %p147 = scmp.lt.s32.totalorder %s9, 8
    %p148 = pnand %p146, %p147
    %p149 = pneg %p148
    // Predicated region
    $region9: #{_mm.1} parent=5 // pred_check
      _
    $region10: #{_mm.1} parent=5 // pred_check_branch
      %151 = sbr.rel (%p148) target = $region12
    $region11: #{_mm.1} parent=5 // pred_region
      %s152 = ssub.s32 %s9, 1
      // Predicated region
      $region13: #{_mm.1} parent=11 // pred_check
        %p153 = pneg %p84
      $region14: #{_mm.1} parent=11 // pred_check_branch
        %155 = sbr.rel (%p153) target = $region16
      $region15: #{_mm.1} parent=11 // pred_region
        %s156 = smul.u32 6, %s21
        %p157 = scmp.lt.s32.totalorder %s156, 5
        %s158 = scalar_select %p157, %s156, 5
        %p159 = scmp.lt.s32.totalorder %s20, 0
        %s160 = scalar_select %p159, %s20, 0
        %s161 = sadd.s32 %s160, %s158
        %s162 = smul.addr %s161, 4
        %s163 = scalar_lea.vmem %s1, %s162
        %s164 = smul.u32 6, %s21
      $region16: #{_mm.1} parent=11 // pred_fallthru
        _
      // Predicated region
      $region17: #{_mm.1} parent=11 // pred_check
        %p165 = pneg %p110
      $region18: #{_mm.1} parent=11 // pred_check_branch
        %167 = sbr.rel (%p165) target = $region20
      $region19: #{_mm.1} parent=11 // pred_region
        %p168 = scmp.lt.s32.totalorder %s20, 0
        %s169 = scalar_select %p168, %s20, 0
        %s170 = scalar_lea.vmem %s2, %s169
      $region20: #{_mm.1} parent=11 // pred_fallthru
        _
    $region12: #{_mm.1} parent=5 // pred_fallthru
      _
    %p171 = scmp.lt.s32.totalorder %s9, 7
    // Predicated region
    $region21: #{_mm.1} parent=5 // pred_check
      %p172 = pneg %p171
    $region22: #{_mm.1} parent=5 // pred_check_branch
      %174 = sbr.rel (%p172) target = $region24
    $region23: #{_mm.1} parent=5 // pred_region
      // Predicated region
      $region25: #{_mm.1} parent=23 // pred_check
        %p175 = pneg %p50
      $region26: #{_mm.1} parent=23 // pred_check_branch
        %177 = sbr.rel (%p175) target = $region28
      $region27: #{_mm.1} parent=23 // pred_region
        %s178 = smul.u32 56, %s16
        %p179 = scmp.lt.s32.totalorder %s178, 391
        %s180 = scalar_select %p179, %s178, 391
        %p181 = scmp.lt.s32.totalorder %s18, 0
        %s182 = scalar_select %p181, %s18, 0
        %s183 = sadd.s32 %s182, %s180
        %s184 = smul.addr %s183, 4
        %s185 = scalar_lea.vmem %s0, %s184
        %s186 = smul.u32 56, %s16
      $region28: #{_mm.1} parent=23 // pred_fallthru
        _
    $region24: #{_mm.1} parent=5 // pred_fallthru
      _
    %p187 = scmp.le.s32.totalorder 1, %s9
    %p188 = scmp.lt.s32.totalorder %s9, 8
    %p189 = pnand %p187, %p188
    %p190 = pneg %p189
    // Predicated region
    $region29: #{_mm.1} parent=5 // pred_check
      _
    $region30: #{_mm.1} parent=5 // pred_check_branch
      %192 = sbr.rel (%p189) target = $region32
    $region31: #{_mm.1} parent=5 // pred_region
      %s193 = ssub.s32 %s9, 1
      %s194 = smul.u32 56, %s19
      %p195 = scmp.lt.s32.totalorder %s194, 391
      %s196 = scalar_select %p195, %s194, 391
      %p197 = scmp.lt.s32.totalorder %s21, 0
      %s198 = scalar_select %p197, %s21, 0
      %s199 = sadd.s32 %s198, %s196
      %s200 = smul.addr %s199, 4
      %s201 = scalar_lea.vmem %s0, %s200
      %p202 = pneg %p56
      %p203 = pneg %p53
      %s204 = smul.u32 6, %s21
      %p205 = scmp.lt.s32.totalorder %s204, 5
      %s206 = scalar_select %p205, %s204, 5
      %p207 = scmp.lt.s32.totalorder %s20, 0
      %s208 = scalar_select %p207, %s20, 0
      %s209 = sadd.s32 %s208, %s206
      %s210 = smul.addr %s209, 4
      %s211 = scalar_lea.vmem %s1, %s210
      %p212 = pneg %p84
      %p213 = pneg %p81
      %p214 = scmp.lt.s32.totalorder %s20, 0
      %s215 = scalar_select %p214, %s20, 0
      %s216 = scalar_lea.vmem %s2, %s215
      %p217 = pneg %p110
      %p218 = pneg %p107
      %p219 = pneg %p138
      %p220 = pneg %p135
      %s221 = smul.u32 56, %s19
      %p222 = scmp.lt.s32.totalorder %s221, 391
      %s223 = scalar_select %p222, %s221, 391
      %p224 = scmp.lt.s32.totalorder %s20, 0
      %s225 = scalar_select %p224, %s20, 0
      %s226 = sadd.s32 %s225, %s223
      %s227 = smul.addr %s226, 8
      %s228 = scalar_lea.vmem %s3, %s227
      %s229 = smul.u32 56, %s19
      %p230 = scmp.lt.s32.totalorder %s229, 391
      %s231 = scalar_select %p230, %s229, 391
      %p232 = scmp.lt.s32.totalorder %s21, 0
      %s233 = scalar_select %p232, %s21, 0
      %s234 = sadd.s32 %s233, %s231
      %s235 = smul.addr %s234, 4
      %s236 = scalar_lea.vmem %s0, %s235
      %s237 = smul.u32 56, %s19
      %s238 = smul.u32 6, %s21
      %p239 = scmp.lt.s32.totalorder %s238, 5
      %s240 = scalar_select %p239, %s238, 5
      %p241 = scmp.lt.s32.totalorder %s20, 0
      %s242 = scalar_select %p241, %s20, 0
      %s243 = sadd.s32 %s242, %s240
      %s244 = smul.addr %s243, 4
      %s245 = scalar_lea.vmem %s1, %s244
      %s246 = smul.u32 6, %s21
      %p247 = scmp.lt.s32.totalorder %s20, 0
      %s248 = scalar_select %p247, %s20, 0
      %s249 = scalar_lea.vmem %s2, %s248
      %s250 = smul.u32 56, %s19
      %p251 = scmp.lt.s32.totalorder %s250, 391
      %s252 = scalar_select %p251, %s250, 391
      %p253 = scmp.lt.s32.totalorder %s20, 0
      %s254 = scalar_select %p253, %s20, 0
      %s255 = sadd.s32 %s254, %s252
      %s256 = smul.addr %s255, 8
      %s257 = scalar_lea.vmem %s3, %s256
      %s258 = smul.u32 56, %s19
      %p260 = scmp.eq.s32.totalorder %s21, 0
      // Predicated region
      $region33: #{_mm.1} parent=31 // pred_check
        %p261 = pneg %p260
      $region34: #{_mm.1} parent=31 // pred_check_branch
        %263 = sbr.rel (%p261) target = $region36
      $region35: #{_mm.1} parent=31 // pred_region
        %vm264 = vcmask 392192
        %265 = vst.msk [vmem:[#allocation2] sm:$0xff] %vm264, 0.0
        %266 = vst.msk [vmem:[#allocation2 + $0x8] sm:$0xff] %vm264, 0.0
        %267 = vst.msk [vmem:[#allocation2 + $0x10] sm:$0xff] %vm264, 0.0
        %268 = vst.msk [vmem:[#allocation2 + $0x18] sm:$0xff] %vm264, 0.0
        %269 = vst.msk [vmem:[#allocation2 + $0x20] sm:$0xff] %vm264, 0.0
        %270 = vst.msk [vmem:[#allocation2 + $0x28] sm:$0xff] %vm264, 0.0
        %271 = vst.msk [vmem:[#allocation2 + $0x30] sm:$0xff] %vm264, 0.0
        %272 = vst.msk [vmem:[#allocation2 + $0x38] sm:$0xff] %vm264, 0.0
        %273 = vst.msk [vmem:[#allocation2 + $0x40] sm:$0xff] %vm264, 0.0
        %274 = vst.msk [vmem:[#allocation2 + $0x48] sm:$0xff] %vm264, 0.0
        %275 = vst.msk [vmem:[#allocation2 + $0x50] sm:$0xff] %vm264, 0.0
        %276 = vst.msk [vmem:[#allocation2 + $0x58] sm:$0xff] %vm264, 0.0
        %277 = vst.msk [vmem:[#allocation2 + $0x60] sm:$0xff] %vm264, 0.0
        %278 = vst.msk [vmem:[#allocation2 + $0x68] sm:$0xff] %vm264, 0.0
        %279 = vst.msk [vmem:[#allocation2 + $0x70] sm:$0xff] %vm264, 0.0
        %280 = vst.msk [vmem:[#allocation2 + $0x78] sm:$0xff] %vm264, 0.0
        %281 = vst.msk [vmem:[#allocation2 + $0x80] sm:$0xff] %vm264, 0.0
        %282 = vst.msk [vmem:[#allocation2 + $0x88] sm:$0xff] %vm264, 0.0
        %283 = vst.msk [vmem:[#allocation2 + $0x90] sm:$0xff] %vm264, 0.0
        %284 = vst.msk [vmem:[#allocation2 + $0x98] sm:$0xff] %vm264, 0.0
        %285 = vst.msk [vmem:[#allocation2 + $0xa0] sm:$0xff] %vm264, 0.0
        %286 = vst.msk [vmem:[#allocation2 + $0xa8] sm:$0xff] %vm264, 0.0
        %287 = vst.msk [vmem:[#allocation2 + $0xb0] sm:$0xff] %vm264, 0.0
        %288 = vst.msk [vmem:[#allocation2 + $0xb8] sm:$0xff] %vm264, 0.0
        %289 = vst.msk [vmem:[#allocation2 + $0xc0] sm:$0xff] %vm264, 0.0
        %290 = vst.msk [vmem:[#allocation2 + $0xc8] sm:$0xff] %vm264, 0.0
        %291 = vst.msk [vmem:[#allocation2 + $0xd0] sm:$0xff] %vm264, 0.0
        %292 = vst.msk [vmem:[#allocation2 + $0xd8] sm:$0xff] %vm264, 0.0
        %293 = vst.msk [vmem:[#allocation2 + $0xe0] sm:$0xff] %vm264, 0.0
        %294 = vst.msk [vmem:[#allocation2 + $0xe8] sm:$0xff] %vm264, 0.0
        %295 = vst.msk [vmem:[#allocation2 + $0xf0] sm:$0xff] %vm264, 0.0
        %296 = vst.msk [vmem:[#allocation2 + $0xf8] sm:$0xff] %vm264, 0.0
        %297 = vst.msk [vmem:[#allocation2 + $0x100] sm:$0xff] %vm264, 0.0
        %298 = vst.msk [vmem:[#allocation2 + $0x108] sm:$0xff] %vm264, 0.0
        %299 = vst.msk [vmem:[#allocation2 + $0x110] sm:$0xff] %vm264, 0.0
        %300 = vst.msk [vmem:[#allocation2 + $0x118] sm:$0xff] %vm264, 0.0
        %301 = vst.msk [vmem:[#allocation2 + $0x120] sm:$0xff] %vm264, 0.0
        %302 = vst.msk [vmem:[#allocation2 + $0x128] sm:$0xff] %vm264, 0.0
        %303 = vst.msk [vmem:[#allocation2 + $0x130] sm:$0xff] %vm264, 0.0
        %304 = vst.msk [vmem:[#allocation2 + $0x138] sm:$0xff] %vm264, 0.0
        %305 = vst.msk [vmem:[#allocation2 + $0x140] sm:$0xff] %vm264, 0.0
        %306 = vst.msk [vmem:[#allocation2 + $0x148] sm:$0xff] %vm264, 0.0
        %307 = vst.msk [vmem:[#allocation2 + $0x150] sm:$0xff] %vm264, 0.0
        %308 = vst.msk [vmem:[#allocation2 + $0x158] sm:$0xff] %vm264, 0.0
        %309 = vst.msk [vmem:[#allocation2 + $0x160] sm:$0xff] %vm264, 0.0
        %310 = vst.msk [vmem:[#allocation2 + $0x168] sm:$0xff] %vm264, 0.0
        %311 = vst.msk [vmem:[#allocation2 + $0x170] sm:$0xff] %vm264, 0.0
        %312 = vst.msk [vmem:[#allocation2 + $0x178] sm:$0xff] %vm264, 0.0
        %313 = vst.msk [vmem:[#allocation2 + $0x180] sm:$0xff] %vm264, 0.0
        %314 = vst.msk [vmem:[#allocation2 + $0x188] sm:$0xff] %vm264, 0.0
        %315 = vst.msk [vmem:[#allocation2 + $0x190] sm:$0xff] %vm264, 0.0
        %316 = vst.msk [vmem:[#allocation2 + $0x198] sm:$0xff] %vm264, 0.0
        %317 = vst.msk [vmem:[#allocation2 + $0x1a0] sm:$0xff] %vm264, 0.0
        %318 = vst.msk [vmem:[#allocation2 + $0x1a8] sm:$0xff] %vm264, 0.0
        %319 = vst.msk [vmem:[#allocation2 + $0x1b0] sm:$0xff] %vm264, 0.0
        %320 = vst.msk [vmem:[#allocation2 + $0x1b8] sm:$0xff] %vm264, 0.0
      $region36: #{_mm.1} parent=31 // pred_fallthru
        _
      %v321 = vld [vmem:[#allocation2] sm:$0xff]
      %v322 = vld [vmem:[#allocation2 + $0x8] sm:$0xff]
      %v323 = vld [vmem:[#allocation2 + $0x10] sm:$0xff]
      %v324 = vld [vmem:[#allocation2 + $0x18] sm:$0xff]
      %v325 = vld [vmem:[#allocation2 + $0x20] sm:$0xff]
      %v326 = vld [vmem:[#allocation2 + $0x28] sm:$0xff]
      %v327 = vld [vmem:[#allocation2 + $0x30] sm:$0xff]
      %v328 = vld [vmem:[#allocation2 + $0x38] sm:$0xff]
      %v329 = vld [vmem:[#allocation2 + $0x40] sm:$0xff]
      %v330 = vld [vmem:[#allocation2 + $0x48] sm:$0xff]
      %v331 = vld [vmem:[#allocation2 + $0x50] sm:$0xff]
      %v332 = vld [vmem:[#allocation2 + $0x58] sm:$0xff]
      %v333 = vld [vmem:[#allocation2 + $0x60] sm:$0xff]
      %v334 = vld [vmem:[#allocation2 + $0x68] sm:$0xff]
      %v335 = vld [vmem:[#allocation2 + $0x70] sm:$0xff]
      %v336 = vld [vmem:[#allocation2 + $0x78] sm:$0xff]
      %v337 = vld [vmem:[#allocation2 + $0x80] sm:$0xff]
      %v338 = vld [vmem:[#allocation2 + $0x88] sm:$0xff]
      %v339 = vld [vmem:[#allocation2 + $0x90] sm:$0xff]
      %v340 = vld [vmem:[#allocation2 + $0x98] sm:$0xff]
      %v341 = vld [vmem:[#allocation2 + $0xa0] sm:$0xff]
      %v342 = vld [vmem:[#allocation2 + $0xa8] sm:$0xff]
      %v343 = vld [vmem:[#allocation2 + $0xb0] sm:$0xff]
      %v344 = vld [vmem:[#allocation2 + $0xb8] sm:$0xff]
      %v345 = vld [vmem:[#allocation2 + $0xc0] sm:$0xff]
      %v346 = vld [vmem:[#allocation2 + $0xc8] sm:$0xff]
      %v347 = vld [vmem:[#allocation2 + $0xd0] sm:$0xff]
      %v348 = vld [vmem:[#allocation2 + $0xd8] sm:$0xff]
      %v349 = vld [vmem:[#allocation2 + $0xe0] sm:$0xff]
      %v350 = vld [vmem:[#allocation2 + $0xe8] sm:$0xff]
      %v351 = vld [vmem:[#allocation2 + $0xf0] sm:$0xff]
      %v352 = vld [vmem:[#allocation2 + $0xf8] sm:$0xff]
      %v353 = vld [vmem:[#allocation2 + $0x100] sm:$0xff]
      %v354 = vld [vmem:[#allocation2 + $0x108] sm:$0xff]
      %v355 = vld [vmem:[#allocation2 + $0x110] sm:$0xff]
      %v356 = vld [vmem:[#allocation2 + $0x118] sm:$0xff]
      %v357 = vld [vmem:[#allocation2 + $0x120] sm:$0xff]
      %v358 = vld [vmem:[#allocation2 + $0x128] sm:$0xff]
      %v359 = vld [vmem:[#allocation2 + $0x130] sm:$0xff]
      %v360 = vld [vmem:[#allocation2 + $0x138] sm:$0xff]
      %v361 = vld [vmem:[#allocation2 + $0x140] sm:$0xff]
      %v362 = vld [vmem:[#allocation2 + $0x148] sm:$0xff]
      %v363 = vld [vmem:[#allocation2 + $0x150] sm:$0xff]
      %v364 = vld [vmem:[#allocation2 + $0x158] sm:$0xff]
      %v365 = vld [vmem:[#allocation2 + $0x160] sm:$0xff]
      %v366 = vld [vmem:[#allocation2 + $0x168] sm:$0xff]
      %v367 = vld [vmem:[#allocation2 + $0x170] sm:$0xff]
      %v368 = vld [vmem:[#allocation2 + $0x178] sm:$0xff]
      %v369 = vld [vmem:[#allocation2 + $0x180] sm:$0xff]
      %v370 = vld [vmem:[#allocation2 + $0x188] sm:$0xff]
      %v371 = vld [vmem:[#allocation2 + $0x190] sm:$0xff]
      %v372 = vld [vmem:[#allocation2 + $0x198] sm:$0xff]
      %v373 = vld [vmem:[#allocation2 + $0x1a0] sm:$0xff]
      %v374 = vld [vmem:[#allocation2 + $0x1a8] sm:$0xff]
      %v375 = vld [vmem:[#allocation2 + $0x1b0] sm:$0xff]
      %v376 = vld [vmem:[#allocation2 + $0x1b8] sm:$0xff]
      %v377 = vld [vmem:[%s236] sm:$0xf]
      %v378 = vld [vmem:[%s236 + $0x4] sm:$0xf]
      %v379 = vld [vmem:[%s236 + $0x8] sm:$0xf]
      %v380 = vld [vmem:[%s236 + $0xc] sm:$0xf]
      %v381 = vld [vmem:[%s236 + $0x10] sm:$0xf]
      %v382 = vld [vmem:[%s236 + $0x14] sm:$0xf]
      %v383 = vld [vmem:[%s236 + $0x18] sm:$0xf]
      %v384 = vld [vmem:[%s236 + $0x1c] sm:$0xf]
      %v385 = vld [vmem:[%s236 + $0x20] sm:$0xf]
      %v386 = vld [vmem:[%s236 + $0x24] sm:$0xf]
      %v387 = vld [vmem:[%s236 + $0x28] sm:$0xf]
      %v388 = vld [vmem:[%s236 + $0x2c] sm:$0xf]
      %v389 = vld [vmem:[%s236 + $0x30] sm:$0xf]
      %v390 = vld [vmem:[%s236 + $0x34] sm:$0xf]
      %v391 = vld [vmem:[%s236 + $0x38] sm:$0xf]
      %v392 = vld [vmem:[%s236 + $0x3c] sm:$0xf]
      %v393 = vld [vmem:[%s236 + $0x40] sm:$0xf]
      %v394 = vld [vmem:[%s236 + $0x44] sm:$0xf]
      %v395 = vld [vmem:[%s236 + $0x48] sm:$0xf]
      %v396 = vld [vmem:[%s236 + $0x4c] sm:$0xf]
      %v397 = vld [vmem:[%s236 + $0x50] sm:$0xf]
      %v398 = vld [vmem:[%s236 + $0x54] sm:$0xf]
      %v399 = vld [vmem:[%s236 + $0x58] sm:$0xf]
      %v400 = vld [vmem:[%s236 + $0x5c] sm:$0xf]
      %v401 = vld [vmem:[%s236 + $0x60] sm:$0xf]
      %v402 = vld [vmem:[%s236 + $0x64] sm:$0xf]
      %v403 = vld [vmem:[%s236 + $0x68] sm:$0xf]
      %v404 = vld [vmem:[%s236 + $0x6c] sm:$0xf]
      %v405 = vld [vmem:[%s236 + $0x70] sm:$0xf]
      %v406 = vld [vmem:[%s236 + $0x74] sm:$0xf]
      %v407 = vld [vmem:[%s236 + $0x78] sm:$0xf]
      %v408 = vld [vmem:[%s236 + $0x7c] sm:$0xf]
      %v409 = vld [vmem:[%s236 + $0x80] sm:$0xf]
      %v410 = vld [vmem:[%s236 + $0x84] sm:$0xf]
      %v411 = vld [vmem:[%s236 + $0x88] sm:$0xf]
      %v412 = vld [vmem:[%s236 + $0x8c] sm:$0xf]
      %v413 = vld [vmem:[%s236 + $0x90] sm:$0xf]
      %v414 = vld [vmem:[%s236 + $0x94] sm:$0xf]
      %v415 = vld [vmem:[%s236 + $0x98] sm:$0xf]
      %v416 = vld [vmem:[%s236 + $0x9c] sm:$0xf]
      %v417 = vld [vmem:[%s236 + $0xa0] sm:$0xf]
      %v418 = vld [vmem:[%s236 + $0xa4] sm:$0xf]
      %v419 = vld [vmem:[%s236 + $0xa8] sm:$0xf]
      %v420 = vld [vmem:[%s236 + $0xac] sm:$0xf]
      %v421 = vld [vmem:[%s236 + $0xb0] sm:$0xf]
      %v422 = vld [vmem:[%s236 + $0xb4] sm:$0xf]
      %v423 = vld [vmem:[%s236 + $0xb8] sm:$0xf]
      %v424 = vld [vmem:[%s236 + $0xbc] sm:$0xf]
      %v425 = vld [vmem:[%s236 + $0xc0] sm:$0xf]
      %v426 = vld [vmem:[%s236 + $0xc4] sm:$0xf]
      %v427 = vld [vmem:[%s236 + $0xc8] sm:$0xf]
      %v428 = vld [vmem:[%s236 + $0xcc] sm:$0xf]
      %v429 = vld [vmem:[%s236 + $0xd0] sm:$0xf]
      %v430 = vld [vmem:[%s236 + $0xd4] sm:$0xf]
      %v431 = vld [vmem:[%s236 + $0xd8] sm:$0xf]
      %v432 = vld [vmem:[%s236 + $0xdc] sm:$0xf]
      %v433 = vld [vmem:[%s245] sm:$0xf]
      %v434 = vld [vmem:[%s245 + $0x4] sm:$0xf]
      %v435 = vld [vmem:[%s245 + $0x8] sm:$0xf]
      %v436 = vld [vmem:[%s245 + $0xc] sm:$0xf]
      %v437 = vld [vmem:[%s245 + $0x10] sm:$0xf]
      %v438 = vld [vmem:[%s245 + $0x14] sm:$0xf]
      %v495 = vunpack.c.l.b16 %v377
      %v496 = vunpack.c.l.b16 %v378
      %v497 = vunpack.c.l.b16 %v379
      %v498 = vunpack.c.l.b16 %v380
      %v499 = vunpack.c.l.b16 %v381
      %v500 = vunpack.c.l.b16 %v382
      %v501 = vunpack.c.l.b16 %v383
      %v502 = vunpack.c.l.b16 %v384
      %v503 = vunpack.c.l.b16 %v385
      %v504 = vunpack.c.l.b16 %v386
      %v505 = vunpack.c.l.b16 %v387
      %v506 = vunpack.c.l.b16 %v388
      %v507 = vunpack.c.l.b16 %v389
      %v508 = vunpack.c.l.b16 %v390
      %v509 = vunpack.c.l.b16 %v391
      %v510 = vunpack.c.l.b16 %v392
      %v511 = vunpack.c.l.b16 %v393
      %v512 = vunpack.c.l.b16 %v394
      %v513 = vunpack.c.l.b16 %v395
      %v514 = vunpack.c.l.b16 %v396
      %v515 = vunpack.c.l.b16 %v397
      %v516 = vunpack.c.l.b16 %v398
      %v517 = vunpack.c.l.b16 %v399
      %v518 = vunpack.c.l.b16 %v400
      %v519 = vunpack.c.l.b16 %v401
      %v520 = vunpack.c.l.b16 %v402
      %v521 = vunpack.c.l.b16 %v403
      %v522 = vunpack.c.l.b16 %v404
      %v523 = vunpack.c.l.b16 %v405
      %v524 = vunpack.c.l.b16 %v406
      %v525 = vunpack.c.l.b16 %v407
      %v526 = vunpack.c.l.b16 %v408
      %v527 = vunpack.c.l.b16 %v409
      %v528 = vunpack.c.l.b16 %v410
      %v529 = vunpack.c.l.b16 %v411
      %v530 = vunpack.c.l.b16 %v412
      %v531 = vunpack.c.l.b16 %v413
      %v532 = vunpack.c.l.b16 %v414
      %v533 = vunpack.c.l.b16 %v415
      %v534 = vunpack.c.l.b16 %v416
      %v535 = vunpack.c.l.b16 %v417
      %v536 = vunpack.c.l.b16 %v418
      %v537 = vunpack.c.l.b16 %v419
      %v538 = vunpack.c.l.b16 %v420
      %v539 = vunpack.c.l.b16 %v421
      %v540 = vunpack.c.l.b16 %v422
      %v541 = vunpack.c.l.b16 %v423
      %v542 = vunpack.c.l.b16 %v424
      %v543 = vunpack.c.l.b16 %v425
      %v544 = vunpack.c.l.b16 %v426
      %v545 = vunpack.c.l.b16 %v427
      %v546 = vunpack.c.l.b16 %v428
      %v547 = vunpack.c.l.b16 %v429
      %v548 = vunpack.c.l.b16 %v430
      %v549 = vunpack.c.l.b16 %v431
      %v550 = vunpack.c.l.b16 %v432
      %v551 = vpack.c.b16 %v496, %v495
      %v552 = vpack.c.b16 %v498, %v497
      %v553 = vpack.c.b16 %v500, %v499
      %v554 = vpack.c.b16 %v502, %v501
      %v555 = vpack.c.b16 %v504, %v503
      %v556 = vpack.c.b16 %v506, %v505
      %v557 = vpack.c.b16 %v508, %v507
      %v558 = vpack.c.b16 %v510, %v509
      %v559 = vpack.c.b16 %v512, %v511
      %v560 = vpack.c.b16 %v514, %v513
      %v561 = vpack.c.b16 %v516, %v515
      %v562 = vpack.c.b16 %v518, %v517
      %v563 = vpack.c.b16 %v520, %v519
      %v564 = vpack.c.b16 %v522, %v521
      %v565 = vpack.c.b16 %v524, %v523
      %v566 = vpack.c.b16 %v526, %v525
      %v567 = vpack.c.b16 %v528, %v527
      %v568 = vpack.c.b16 %v530, %v529
      %v569 = vpack.c.b16 %v532, %v531
      %v570 = vpack.c.b16 %v534, %v533
      %v571 = vpack.c.b16 %v536, %v535
      %v572 = vpack.c.b16 %v538, %v537
      %v573 = vpack.c.b16 %v540, %v539
      %v574 = vpack.c.b16 %v542, %v541
      %v575 = vpack.c.b16 %v544, %v543
      %v576 = vpack.c.b16 %v546, %v545
      %v577 = vpack.c.b16 %v548, %v547
      %v578 = vpack.c.b16 %v550, %v549
      %v585 = vunpack.c.l.b16 %v433
      %v586 = vunpack.c.l.b16 %v434
      %v587 = vunpack.c.l.b16 %v435
      %v588 = vunpack.c.l.b16 %v436
      %v589 = vunpack.c.l.b16 %v437
      %v590 = vunpack.c.l.b16 %v438
      %v591 = vpack.c.b16 %v586, %v585
      %v592 = vpack.c.b16 %v588, %v587
      %v593 = vpack.c.b16 %v590, %v589
      %vm597 = vcmask 392192
      %v599 = vsel %vm597, %v551, 0
      %v602 = vsel %vm597, %v552, 0
      %v605 = vsel %vm597, %v553, 0
      %v608 = vsel %vm597, %v554, 0
      %v611 = vsel %vm597, %v555, 0
      %v614 = vsel %vm597, %v556, 0
      %v617 = vsel %vm597, %v557, 0
      %v620 = vsel %vm597, %v558, 0
      %v623 = vsel %vm597, %v559, 0
      %v626 = vsel %vm597, %v560, 0
      %v629 = vsel %vm597, %v561, 0
      %v632 = vsel %vm597, %v562, 0
      %v635 = vsel %vm597, %v563, 0
      %v638 = vsel %vm597, %v564, 0
      %v641 = vsel %vm597, %v565, 0
      %v644 = vsel %vm597, %v566, 0
      %v647 = vsel %vm597, %v567, 0
      %v650 = vsel %vm597, %v568, 0
      %v653 = vsel %vm597, %v569, 0
      %v656 = vsel %vm597, %v570, 0
      %v659 = vsel %vm597, %v571, 0
      %v662 = vsel %vm597, %v572, 0
      %v665 = vsel %vm597, %v573, 0
      %v668 = vsel %vm597, %v574, 0
      %v671 = vsel %vm597, %v575, 0
      %v674 = vsel %vm597, %v576, 0
      %v677 = vsel %vm597, %v577, 0
      %v680 = vsel %vm597, %v578, 0
      %682 = vmatprep.subr.bf16.mxu0 0
      %683 = vmatpush1.bf16.msra.mxu0 0
      %684 = vmatprep.subr.bf16.mxu0 0
      %685 = vmatpush1.bf16.msra.mxu0 0
      %686 = vmatprep.subr.bf16.mxu0 0
      %687 = vmatpush1.bf16.msra.mxu0 0
      %688 = vmatprep.subr.bf16.mxu0 0
      %689 = vmatpush1.bf16.msra.mxu0 0
      %690 = vmatprep.subr.bf16.mxu0 0
      %691 = vmatpush1.bf16.msra.mxu0 0
      %692 = vmatprep.subr.bf16.mxu0 0
      %693 = vmatpush1.bf16.msra.mxu0 %v593
      %694 = vmatprep.subr.bf16.mxu0 0
      %695 = vmatpush1.bf16.msra.mxu0 %v592
      %696 = vmatprep.subr.bf16.mxu0 0
      %697 = vmatpush1.bf16.msra.mxu0 %v591
      %698 = vmatprep.subr.bf16.mxu0 0
      %699 = vmatpush2.bf16.msra.mxu0 0
      %700 = vmatprep.subr.bf16.mxu0 0
      %701 = vmatpush2.bf16.msra.mxu0 0
      %702 = vmatprep.subr.bf16.mxu0 0
      %703 = vmatpush2.bf16.msra.mxu0 0
      %704 = vmatprep.subr.bf16.mxu0 0
      %705 = vmatpush2.bf16.msra.mxu0 0
      %706 = vmatprep.subr.bf16.mxu0 0
      %707 = vmatpush2.bf16.msra.mxu0 0
      %708 = vmatprep.subr.bf16.mxu0 0
      %709 = vmatpush2.bf16.msra.mxu0 0
      %710 = vmatprep.subr.bf16.mxu0 0
      %711 = vmatpush2.bf16.msra.mxu0 0
      %712 = vmatprep.subr.bf16.mxu0 0
      %713 = vmatpush2.bf16.msra.mxu0 0
      %714 = vmatprep.mubr.bf16.mxu0 0
      %715 = vmatmul.mubr.bf16.gmra.mxu0 %v599
      %v716 = vpop.f32.mrf.mxu0
      %v717 = vadd.f32 0.0, %v716
      %v718 = vpop.f32.mrf.mxu0
      %v719 = vpop.f32.mrf.mxu0
      %v720 = vadd.f32 0.0, %v719
      %v721 = vpop.f32.mrf.mxu0
      %722 = vmatprep.mubr.bf16.mxu0 0
      %723 = vmatmul.mubr.bf16.gmra.mxu0 %v602
      %v724 = vpop.f32.mrf.mxu0
      %v725 = vadd.f32 0.0, %v724
      %v726 = vpop.f32.mrf.mxu0
      %v727 = vpop.f32.mrf.mxu0
      %v728 = vadd.f32 0.0, %v727
      %v729 = vpop.f32.mrf.mxu0
      %730 = vmatprep.mubr.bf16.mxu0 0
      %731 = vmatmul.mubr.bf16.gmra.mxu0 %v605
      %v732 = vpop.f32.mrf.mxu0
      %v733 = vadd.f32 0.0, %v732
      %v734 = vpop.f32.mrf.mxu0
      %v735 = vpop.f32.mrf.mxu0
      %v736 = vadd.f32 0.0, %v735
      %v737 = vpop.f32.mrf.mxu0
      %738 = vmatprep.mubr.bf16.mxu0 0
      %739 = vmatmul.mubr.bf16.gmra.mxu0 %v608
      %v740 = vpop.f32.mrf.mxu0
      %v741 = vadd.f32 0.0, %v740
      %v742 = vpop.f32.mrf.mxu0
      %v743 = vpop.f32.mrf.mxu0
      %v744 = vadd.f32 0.0, %v743
      %v745 = vpop.f32.mrf.mxu0
      %746 = vmatprep.mubr.bf16.mxu0 0
      %747 = vmatmul.mubr.bf16.gmra.mxu0 %v611
      %v748 = vpop.f32.mrf.mxu0
      %v749 = vadd.f32 0.0, %v748
      %v750 = vpop.f32.mrf.mxu0
      %v751 = vpop.f32.mrf.mxu0
      %v752 = vadd.f32 0.0, %v751
      %v753 = vpop.f32.mrf.mxu0
      %754 = vmatprep.mubr.bf16.mxu0 0
      %755 = vmatmul.mubr.bf16.gmra.mxu0 %v614
      %v756 = vpop.f32.mrf.mxu0
      %v757 = vadd.f32 0.0, %v756
      %v758 = vpop.f32.mrf.mxu0
      %v759 = vpop.f32.mrf.mxu0
      %v760 = vadd.f32 0.0, %v759
      %v761 = vpop.f32.mrf.mxu0
      %762 = vmatprep.mubr.bf16.mxu0 0
      %763 = vmatmul.mubr.bf16.gmra.mxu0 %v617
      %v764 = vpop.f32.mrf.mxu0
      %v765 = vadd.f32 0.0, %v764
      %v766 = vpop.f32.mrf.mxu0
      %v767 = vpop.f32.mrf.mxu0
      %v768 = vadd.f32 0.0, %v767
      %v769 = vpop.f32.mrf.mxu0
      %770 = vmatprep.mubr.bf16.mxu0 0
      %771 = vmatmul.mubr.bf16.gmra.mxu0 %v620
      %v772 = vpop.f32.mrf.mxu0
      %v773 = vadd.f32 0.0, %v772
      %v774 = vpop.f32.mrf.mxu0
      %v775 = vpop.f32.mrf.mxu0
      %v776 = vadd.f32 0.0, %v775
      %v777 = vpop.f32.mrf.mxu0
      %778 = vmatprep.mubr.bf16.mxu0 0
      %779 = vmatmul.mubr.bf16.gmra.mxu0 %v623
      %v780 = vpop.f32.mrf.mxu0
      %v781 = vadd.f32 0.0, %v780
      %v782 = vpop.f32.mrf.mxu0
      %v783 = vpop.f32.mrf.mxu0
      %v784 = vadd.f32 0.0, %v783
      %v785 = vpop.f32.mrf.mxu0
      %786 = vmatprep.mubr.bf16.mxu0 0
      %787 = vmatmul.mubr.bf16.gmra.mxu0 %v626
      %v788 = vpop.f32.mrf.mxu0
      %v789 = vadd.f32 0.0, %v788
      %v790 = vpop.f32.mrf.mxu0
      %v791 = vpop.f32.mrf.mxu0
      %v792 = vadd.f32 0.0, %v791
      %v793 = vpop.f32.mrf.mxu0
      %794 = vmatprep.mubr.bf16.mxu0 0
      %795 = vmatmul.mubr.bf16.gmra.mxu0 %v629
      %v796 = vpop.f32.mrf.mxu0
      %v797 = vadd.f32 0.0, %v796
      %v798 = vpop.f32.mrf.mxu0
      %v799 = vpop.f32.mrf.mxu0
      %v800 = vadd.f32 0.0, %v799
      %v801 = vpop.f32.mrf.mxu0
      %802 = vmatprep.mubr.bf16.mxu0 0
      %803 = vmatmul.mubr.bf16.gmra.mxu0 %v632
      %v804 = vpop.f32.mrf.mxu0
      %v805 = vadd.f32 0.0, %v804
      %v806 = vpop.f32.mrf.mxu0
      %v807 = vpop.f32.mrf.mxu0
      %v808 = vadd.f32 0.0, %v807
      %v809 = vpop.f32.mrf.mxu0
      %810 = vmatprep.mubr.bf16.mxu0 0
      %811 = vmatmul.mubr.bf16.gmra.mxu0 %v635
      %v812 = vpop.f32.mrf.mxu0
      %v813 = vadd.f32 0.0, %v812
      %v814 = vpop.f32.mrf.mxu0
      %v815 = vpop.f32.mrf.mxu0
      %v816 = vadd.f32 0.0, %v815
      %v817 = vpop.f32.mrf.mxu0
      %818 = vmatprep.mubr.bf16.mxu0 0
      %819 = vmatmul.mubr.bf16.gmra.mxu0 %v638
      %v820 = vpop.f32.mrf.mxu0
      %v821 = vadd.f32 0.0, %v820
      %v822 = vpop.f32.mrf.mxu0
      %v823 = vpop.f32.mrf.mxu0
      %v824 = vadd.f32 0.0, %v823
      %v825 = vpop.f32.mrf.mxu0
      %826 = vmatprep.mubr.bf16.mxu0 0
      %827 = vmatmul.mubr.bf16.gmra.mxu0 %v641
      %v828 = vpop.f32.mrf.mxu0
      %v829 = vadd.f32 0.0, %v828
      %v830 = vpop.f32.mrf.mxu0
      %v831 = vpop.f32.mrf.mxu0
      %v832 = vadd.f32 0.0, %v831
      %v833 = vpop.f32.mrf.mxu0
      %834 = vmatprep.mubr.bf16.mxu0 0
      %835 = vmatmul.mubr.bf16.gmra.mxu0 %v644
      %v836 = vpop.f32.mrf.mxu0
      %v837 = vadd.f32 0.0, %v836
      %v838 = vpop.f32.mrf.mxu0
      %v839 = vpop.f32.mrf.mxu0
      %v840 = vadd.f32 0.0, %v839
      %v841 = vpop.f32.mrf.mxu0
      %842 = vmatprep.mubr.bf16.mxu0 0
      %843 = vmatmul.mubr.bf16.gmra.mxu0 %v647
      %v844 = vpop.f32.mrf.mxu0
      %v845 = vadd.f32 0.0, %v844
      %v846 = vpop.f32.mrf.mxu0
      %v847 = vpop.f32.mrf.mxu0
      %v848 = vadd.f32 0.0, %v847
      %v849 = vpop.f32.mrf.mxu0
      %850 = vmatprep.mubr.bf16.mxu0 0
      %851 = vmatmul.mubr.bf16.gmra.mxu0 %v650
      %v852 = vpop.f32.mrf.mxu0
      %v853 = vadd.f32 0.0, %v852
      %v854 = vpop.f32.mrf.mxu0
      %v855 = vpop.f32.mrf.mxu0
      %v856 = vadd.f32 0.0, %v855
      %v857 = vpop.f32.mrf.mxu0
      %858 = vmatprep.mubr.bf16.mxu0 0
      %859 = vmatmul.mubr.bf16.gmra.mxu0 %v653
      %v860 = vpop.f32.mrf.mxu0
      %v861 = vadd.f32 0.0, %v860
      %v862 = vpop.f32.mrf.mxu0
      %v863 = vpop.f32.mrf.mxu0
      %v864 = vadd.f32 0.0, %v863
      %v865 = vpop.f32.mrf.mxu0
      %866 = vmatprep.mubr.bf16.mxu0 0
      %867 = vmatmul.mubr.bf16.gmra.mxu0 %v656
      %v868 = vpop.f32.mrf.mxu0
      %v869 = vadd.f32 0.0, %v868
      %v870 = vpop.f32.mrf.mxu0
      %v871 = vpop.f32.mrf.mxu0
      %v872 = vadd.f32 0.0, %v871
      %v873 = vpop.f32.mrf.mxu0
      %874 = vmatprep.mubr.bf16.mxu0 0
      %875 = vmatmul.mubr.bf16.gmra.mxu0 %v659
      %v876 = vpop.f32.mrf.mxu0
      %v877 = vadd.f32 0.0, %v876
      %v878 = vpop.f32.mrf.mxu0
      %v879 = vpop.f32.mrf.mxu0
      %v880 = vadd.f32 0.0, %v879
      %v881 = vpop.f32.mrf.mxu0
      %882 = vmatprep.mubr.bf16.mxu0 0
      %883 = vmatmul.mubr.bf16.gmra.mxu0 %v662
      %v884 = vpop.f32.mrf.mxu0
      %v885 = vadd.f32 0.0, %v884
      %v886 = vpop.f32.mrf.mxu0
      %v887 = vpop.f32.mrf.mxu0
      %v888 = vadd.f32 0.0, %v887
      %v889 = vpop.f32.mrf.mxu0
      %890 = vmatprep.mubr.bf16.mxu0 0
      %891 = vmatmul.mubr.bf16.gmra.mxu0 %v665
      %v892 = vpop.f32.mrf.mxu0
      %v893 = vadd.f32 0.0, %v892
      %v894 = vpop.f32.mrf.mxu0
      %v895 = vpop.f32.mrf.mxu0
      %v896 = vadd.f32 0.0, %v895
      %v897 = vpop.f32.mrf.mxu0
      %898 = vmatprep.mubr.bf16.mxu0 0
      %899 = vmatmul.mubr.bf16.gmra.mxu0 %v668
      %v900 = vpop.f32.mrf.mxu0
      %v901 = vadd.f32 0.0, %v900
      %v902 = vpop.f32.mrf.mxu0
      %v903 = vpop.f32.mrf.mxu0
      %v904 = vadd.f32 0.0, %v903
      %v905 = vpop.f32.mrf.mxu0
      %906 = vmatprep.mubr.bf16.mxu0 0
      %907 = vmatmul.mubr.bf16.gmra.mxu0 %v671
      %v908 = vpop.f32.mrf.mxu0
      %v909 = vadd.f32 0.0, %v908
      %v910 = vpop.f32.mrf.mxu0
      %v911 = vpop.f32.mrf.mxu0
      %v912 = vadd.f32 0.0, %v911
      %v913 = vpop.f32.mrf.mxu0
      %914 = vmatprep.mubr.bf16.mxu0 0
      %915 = vmatmul.mubr.bf16.gmra.mxu0 %v674
      %v916 = vpop.f32.mrf.mxu0
      %v917 = vadd.f32 0.0, %v916
      %v918 = vpop.f32.mrf.mxu0
      %v919 = vpop.f32.mrf.mxu0
      %v920 = vadd.f32 0.0, %v919
      %v921 = vpop.f32.mrf.mxu0
      %922 = vmatprep.mubr.bf16.mxu0 0
      %923 = vmatmul.mubr.bf16.gmra.mxu0 %v677
      %v924 = vpop.f32.mrf.mxu0
      %v925 = vadd.f32 0.0, %v924
      %v926 = vpop.f32.mrf.mxu0
      %v927 = vpop.f32.mrf.mxu0
      %v928 = vadd.f32 0.0, %v927
      %v929 = vpop.f32.mrf.mxu0
      %930 = vmatprep.mubr.bf16.mxu0 0
      %931 = vmatmul.mubr.bf16.gmra.mxu0 %v680
      %v932 = vpop.f32.mrf.mxu0
      %v933 = vadd.f32 0.0, %v932
      %v934 = vpop.f32.mrf.mxu0
      %v935 = vpop.f32.mrf.mxu0
      %v936 = vadd.f32 0.0, %v935
      %v937 = vpop.f32.mrf.mxu0
      %938 = vdwg.mxu0
      %v939 = vadd.f32 %v321, %v717
      %v940 = vadd.f32 %v322, %v720
      %v941 = vadd.f32 %v323, %v725
      %v942 = vadd.f32 %v324, %v728
      %v943 = vadd.f32 %v325, %v733
      %v944 = vadd.f32 %v326, %v736
      %v945 = vadd.f32 %v327, %v741
      %v946 = vadd.f32 %v328, %v744
      %v947 = vadd.f32 %v329, %v749
      %v948 = vadd.f32 %v330, %v752
      %v949 = vadd.f32 %v331, %v757
      %v950 = vadd.f32 %v332, %v760
      %v951 = vadd.f32 %v333, %v765
      %v952 = vadd.f32 %v334, %v768
      %v953 = vadd.f32 %v335, %v773
      %v954 = vadd.f32 %v336, %v776
      %v955 = vadd.f32 %v337, %v781
      %v956 = vadd.f32 %v338, %v784
      %v957 = vadd.f32 %v339, %v789
      %v958 = vadd.f32 %v340, %v792
      %v959 = vadd.f32 %v341, %v797
      %v960 = vadd.f32 %v342, %v800
      %v961 = vadd.f32 %v343, %v805
      %v962 = vadd.f32 %v344, %v808
      %v963 = vadd.f32 %v345, %v813
      %v964 = vadd.f32 %v346, %v816
      %v965 = vadd.f32 %v347, %v821
      %v966 = vadd.f32 %v348, %v824
      %v967 = vadd.f32 %v349, %v829
      %v968 = vadd.f32 %v350, %v832
      %v969 = vadd.f32 %v351, %v837
      %v970 = vadd.f32 %v352, %v840
      %v971 = vadd.f32 %v353, %v845
      %v972 = vadd.f32 %v354, %v848
      %v973 = vadd.f32 %v355, %v853
      %v974 = vadd.f32 %v356, %v856
      %v975 = vadd.f32 %v357, %v861
      %v976 = vadd.f32 %v358, %v864
      %v977 = vadd.f32 %v359, %v869
      %v978 = vadd.f32 %v360, %v872
      %v979 = vadd.f32 %v361, %v877
      %v980 = vadd.f32 %v362, %v880
      %v981 = vadd.f32 %v363, %v885
      %v982 = vadd.f32 %v364, %v888
      %v983 = vadd.f32 %v365, %v893
      %v984 = vadd.f32 %v366, %v896
      %v985 = vadd.f32 %v367, %v901
      %v986 = vadd.f32 %v368, %v904
      %v987 = vadd.f32 %v369, %v909
      %v988 = vadd.f32 %v370, %v912
      %v989 = vadd.f32 %v371, %v917
      %v990 = vadd.f32 %v372, %v920
      %v991 = vadd.f32 %v373, %v925
      %v992 = vadd.f32 %v374, %v928
      %v993 = vadd.f32 %v375, %v933
      %v994 = vadd.f32 %v376, %v936
      %995 = vst.msk [vmem:[#allocation2] sm:$0xff] %vm597, %v939
      %996 = vst.msk [vmem:[#allocation2 + $0x8] sm:$0xff] %vm597, %v940
      %997 = vst.msk [vmem:[#allocation2 + $0x10] sm:$0xff] %vm597, %v941
      %998 = vst.msk [vmem:[#allocation2 + $0x18] sm:$0xff] %vm597, %v942
      %999 = vst.msk [vmem:[#allocation2 + $0x20] sm:$0xff] %vm597, %v943
      %1000 = vst.msk [vmem:[#allocation2 + $0x28] sm:$0xff] %vm597, %v944
      %1001 = vst.msk [vmem:[#allocation2 + $0x30] sm:$0xff] %vm597, %v945
      %1002 = vst.msk [vmem:[#allocation2 + $0x38] sm:$0xff] %vm597, %v946
      %1003 = vst.msk [vmem:[#allocation2 + $0x40] sm:$0xff] %vm597, %v947
      %1004 = vst.msk [vmem:[#allocation2 + $0x48] sm:$0xff] %vm597, %v948
      %1005 = vst.msk [vmem:[#allocation2 + $0x50] sm:$0xff] %vm597, %v949
      %1006 = vst.msk [vmem:[#allocation2 + $0x58] sm:$0xff] %vm597, %v950
      %1007 = vst.msk [vmem:[#allocation2 + $0x60] sm:$0xff] %vm597, %v951
      %1008 = vst.msk [vmem:[#allocation2 + $0x68] sm:$0xff] %vm597, %v952
      %1009 = vst.msk [vmem:[#allocation2 + $0x70] sm:$0xff] %vm597, %v953
      %1010 = vst.msk [vmem:[#allocation2 + $0x78] sm:$0xff] %vm597, %v954
      %1011 = vst.msk [vmem:[#allocation2 + $0x80] sm:$0xff] %vm597, %v955
      %1012 = vst.msk [vmem:[#allocation2 + $0x88] sm:$0xff] %vm597, %v956
      %1013 = vst.msk [vmem:[#allocation2 + $0x90] sm:$0xff] %vm597, %v957
      %1014 = vst.msk [vmem:[#allocation2 + $0x98] sm:$0xff] %vm597, %v958
      %1015 = vst.msk [vmem:[#allocation2 + $0xa0] sm:$0xff] %vm597, %v959
      %1016 = vst.msk [vmem:[#allocation2 + $0xa8] sm:$0xff] %vm597, %v960
      %1017 = vst.msk [vmem:[#allocation2 + $0xb0] sm:$0xff] %vm597, %v961
      %1018 = vst.msk [vmem:[#allocation2 + $0xb8] sm:$0xff] %vm597, %v962
      %1019 = vst.msk [vmem:[#allocation2 + $0xc0] sm:$0xff] %vm597, %v963
      %1020 = vst.msk [vmem:[#allocation2 + $0xc8] sm:$0xff] %vm597, %v964
      %1021 = vst.msk [vmem:[#allocation2 + $0xd0] sm:$0xff] %vm597, %v965
      %1022 = vst.msk [vmem:[#allocation2 + $0xd8] sm:$0xff] %vm597, %v966
      %1023 = vst.msk [vmem:[#allocation2 + $0xe0] sm:$0xff] %vm597, %v967
      %1024 = vst.msk [vmem:[#allocation2 + $0xe8] sm:$0xff] %vm597, %v968
      %1025 = vst.msk [vmem:[#allocation2 + $0xf0] sm:$0xff] %vm597, %v969
      %1026 = vst.msk [vmem:[#allocation2 + $0xf8] sm:$0xff] %vm597, %v970
      %1027 = vst.msk [vmem:[#allocation2 + $0x100] sm:$0xff] %vm597, %v971
      %1028 = vst.msk [vmem:[#allocation2 + $0x108] sm:$0xff] %vm597, %v972
      %1029 = vst.msk [vmem:[#allocation2 + $0x110] sm:$0xff] %vm597, %v973
      %1030 = vst.msk [vmem:[#allocation2 + $0x118] sm:$0xff] %vm597, %v974
      %1031 = vst.msk [vmem:[#allocation2 + $0x120] sm:$0xff] %vm597, %v975
      %1032 = vst.msk [vmem:[#allocation2 + $0x128] sm:$0xff] %vm597, %v976
      %1033 = vst.msk [vmem:[#allocation2 + $0x130] sm:$0xff] %vm597, %v977
      %1034 = vst.msk [vmem:[#allocation2 + $0x138] sm:$0xff] %vm597, %v978
      %1035 = vst.msk [vmem:[#allocation2 + $0x140] sm:$0xff] %vm597, %v979
      %1036 = vst.msk [vmem:[#allocation2 + $0x148] sm:$0xff] %vm597, %v980
      %1037 = vst.msk [vmem:[#allocation2 + $0x150] sm:$0xff] %vm597, %v981
      %1038 = vst.msk [vmem:[#allocation2 + $0x158] sm:$0xff] %vm597, %v982
      %1039 = vst.msk [vmem:[#allocation2 + $0x160] sm:$0xff] %vm597, %v983
      %1040 = vst.msk [vmem:[#allocation2 + $0x168] sm:$0xff] %vm597, %v984
      %1041 = vst.msk [vmem:[#allocation2 + $0x170] sm:$0xff] %vm597, %v985
      %1042 = vst.msk [vmem:[#allocation2 + $0x178] sm:$0xff] %vm597, %v986
      %1043 = vst.msk [vmem:[#allocation2 + $0x180] sm:$0xff] %vm597, %v987
      %1044 = vst.msk [vmem:[#allocation2 + $0x188] sm:$0xff] %vm597, %v988
      %1045 = vst.msk [vmem:[#allocation2 + $0x190] sm:$0xff] %vm597, %v989
      %1046 = vst.msk [vmem:[#allocation2 + $0x198] sm:$0xff] %vm597, %v990
      %1047 = vst.msk [vmem:[#allocation2 + $0x1a0] sm:$0xff] %vm597, %v991
      %1048 = vst.msk [vmem:[#allocation2 + $0x1a8] sm:$0xff] %vm597, %v992
      %1049 = vst.msk [vmem:[#allocation2 + $0x1b0] sm:$0xff] %vm597, %v993
      %1050 = vst.msk [vmem:[#allocation2 + $0x1b8] sm:$0xff] %vm597, %v994
      // Predicated region
      $region37: #{_mm.1} parent=31 // pred_check
        %p1051 = pneg %p260
      $region38: #{_mm.1} parent=31 // pred_check_branch
        %1053 = sbr.rel (%p1051) target = $region40
      $region39: #{_mm.1} parent=31 // pred_region
        %v1054 = vld [vmem:[#allocation2] sm:$0xff]
        %v1055 = vld [vmem:[#allocation2 + $0x8] sm:$0xff]
        %v1056 = vld [vmem:[#allocation2 + $0x10] sm:$0xff]
        %v1057 = vld [vmem:[#allocation2 + $0x18] sm:$0xff]
        %v1058 = vld [vmem:[#allocation2 + $0x20] sm:$0xff]
        %v1059 = vld [vmem:[#allocation2 + $0x28] sm:$0xff]
        %v1060 = vld [vmem:[#allocation2 + $0x30] sm:$0xff]
        %v1061 = vld [vmem:[#allocation2 + $0x38] sm:$0xff]
        %v1062 = vld [vmem:[#allocation2 + $0x40] sm:$0xff]
        %v1063 = vld [vmem:[#allocation2 + $0x48] sm:$0xff]
        %v1064 = vld [vmem:[#allocation2 + $0x50] sm:$0xff]
        %v1065 = vld [vmem:[#allocation2 + $0x58] sm:$0xff]
        %v1066 = vld [vmem:[#allocation2 + $0x60] sm:$0xff]
        %v1067 = vld [vmem:[#allocation2 + $0x68] sm:$0xff]
        %v1068 = vld [vmem:[#allocation2 + $0x70] sm:$0xff]
        %v1069 = vld [vmem:[#allocation2 + $0x78] sm:$0xff]
        %v1070 = vld [vmem:[#allocation2 + $0x80] sm:$0xff]
        %v1071 = vld [vmem:[#allocation2 + $0x88] sm:$0xff]
        %v1072 = vld [vmem:[#allocation2 + $0x90] sm:$0xff]
        %v1073 = vld [vmem:[#allocation2 + $0x98] sm:$0xff]
        %v1074 = vld [vmem:[#allocation2 + $0xa0] sm:$0xff]
        %v1075 = vld [vmem:[#allocation2 + $0xa8] sm:$0xff]
        %v1076 = vld [vmem:[#allocation2 + $0xb0] sm:$0xff]
        %v1077 = vld [vmem:[#allocation2 + $0xb8] sm:$0xff]
        %v1078 = vld [vmem:[#allocation2 + $0xc0] sm:$0xff]
        %v1079 = vld [vmem:[#allocation2 + $0xc8] sm:$0xff]
        %v1080 = vld [vmem:[#allocation2 + $0xd0] sm:$0xff]
        %v1081 = vld [vmem:[#allocation2 + $0xd8] sm:$0xff]
        %v1082 = vld [vmem:[#allocation2 + $0xe0] sm:$0xff]
        %v1083 = vld [vmem:[#allocation2 + $0xe8] sm:$0xff]
        %v1084 = vld [vmem:[#allocation2 + $0xf0] sm:$0xff]
        %v1085 = vld [vmem:[#allocation2 + $0xf8] sm:$0xff]
        %v1086 = vld [vmem:[#allocation2 + $0x100] sm:$0xff]
        %v1087 = vld [vmem:[#allocation2 + $0x108] sm:$0xff]
        %v1088 = vld [vmem:[#allocation2 + $0x110] sm:$0xff]
        %v1089 = vld [vmem:[#allocation2 + $0x118] sm:$0xff]
        %v1090 = vld [vmem:[#allocation2 + $0x120] sm:$0xff]
        %v1091 = vld [vmem:[#allocation2 + $0x128] sm:$0xff]
        %v1092 = vld [vmem:[#allocation2 + $0x130] sm:$0xff]
        %v1093 = vld [vmem:[#allocation2 + $0x138] sm:$0xff]
        %v1094 = vld [vmem:[#allocation2 + $0x140] sm:$0xff]
        %v1095 = vld [vmem:[#allocation2 + $0x148] sm:$0xff]
        %v1096 = vld [vmem:[#allocation2 + $0x150] sm:$0xff]
        %v1097 = vld [vmem:[#allocation2 + $0x158] sm:$0xff]
        %v1098 = vld [vmem:[#allocation2 + $0x160] sm:$0xff]
        %v1099 = vld [vmem:[#allocation2 + $0x168] sm:$0xff]
        %v1100 = vld [vmem:[#allocation2 + $0x170] sm:$0xff]
        %v1101 = vld [vmem:[#allocation2 + $0x178] sm:$0xff]
        %v1102 = vld [vmem:[#allocation2 + $0x180] sm:$0xff]
        %v1103 = vld [vmem:[#allocation2 + $0x188] sm:$0xff]
        %v1104 = vld [vmem:[#allocation2 + $0x190] sm:$0xff]
        %v1105 = vld [vmem:[#allocation2 + $0x198] sm:$0xff]
        %v1106 = vld [vmem:[#allocation2 + $0x1a0] sm:$0xff]
        %v1107 = vld [vmem:[#allocation2 + $0x1a8] sm:$0xff]
        %v1108 = vld [vmem:[#allocation2 + $0x1b0] sm:$0xff]
        %v1109 = vld [vmem:[#allocation2 + $0x1b8] sm:$0xff]
        %v1110 = vld [vmem:[%s249] sm:$0x1]
        %v1112 = vlaneseq
        %v1113 = vshrl.u32 %v1112, 7
        %v1114 = vsub.s32 0, %v1113
        %v1115 = vrot.slane %v1110, %v1114
        %v1117 = vadd.f32 %v1054, %v1115
        %v1118 = vadd.f32 %v1055, %v1115
        %v1119 = vadd.f32 %v1056, %v1115
        %v1120 = vadd.f32 %v1057, %v1115
        %v1121 = vadd.f32 %v1058, %v1115
        %v1122 = vadd.f32 %v1059, %v1115
        %v1123 = vadd.f32 %v1060, %v1115
        %v1124 = vadd.f32 %v1061, %v1115
        %v1125 = vadd.f32 %v1062, %v1115
        %v1126 = vadd.f32 %v1063, %v1115
        %v1127 = vadd.f32 %v1064, %v1115
        %v1128 = vadd.f32 %v1065, %v1115
        %v1129 = vadd.f32 %v1066, %v1115
        %v1130 = vadd.f32 %v1067, %v1115
        %v1131 = vadd.f32 %v1068, %v1115
        %v1132 = vadd.f32 %v1069, %v1115
        %v1133 = vadd.f32 %v1070, %v1115
        %v1134 = vadd.f32 %v1071, %v1115
        %v1135 = vadd.f32 %v1072, %v1115
        %v1136 = vadd.f32 %v1073, %v1115
        %v1137 = vadd.f32 %v1074, %v1115
        %v1138 = vadd.f32 %v1075, %v1115
        %v1139 = vadd.f32 %v1076, %v1115
        %v1140 = vadd.f32 %v1077, %v1115
        %v1141 = vadd.f32 %v1078, %v1115
        %v1142 = vadd.f32 %v1079, %v1115
        %v1143 = vadd.f32 %v1080, %v1115
        %v1144 = vadd.f32 %v1081, %v1115
        %v1145 = vadd.f32 %v1082, %v1115
        %v1146 = vadd.f32 %v1083, %v1115
        %v1147 = vadd.f32 %v1084, %v1115
        %v1148 = vadd.f32 %v1085, %v1115
        %v1149 = vadd.f32 %v1086, %v1115
        %v1150 = vadd.f32 %v1087, %v1115
        %v1151 = vadd.f32 %v1088, %v1115
        %v1152 = vadd.f32 %v1089, %v1115
        %v1153 = vadd.f32 %v1090, %v1115
        %v1154 = vadd.f32 %v1091, %v1115
        %v1155 = vadd.f32 %v1092, %v1115
        %v1156 = vadd.f32 %v1093, %v1115
        %v1157 = vadd.f32 %v1094, %v1115
        %v1158 = vadd.f32 %v1095, %v1115
        %v1159 = vadd.f32 %v1096, %v1115
        %v1160 = vadd.f32 %v1097, %v1115
        %v1161 = vadd.f32 %v1098, %v1115
        %v1162 = vadd.f32 %v1099, %v1115
        %v1163 = vadd.f32 %v1100, %v1115
        %v1164 = vadd.f32 %v1101, %v1115
        %v1165 = vadd.f32 %v1102, %v1115
        %v1166 = vadd.f32 %v1103, %v1115
        %v1167 = vadd.f32 %v1104, %v1115
        %v1168 = vadd.f32 %v1105, %v1115
        %v1169 = vadd.f32 %v1106, %v1115
        %v1170 = vadd.f32 %v1107, %v1115
        %v1171 = vadd.f32 %v1108, %v1115
        %v1172 = vadd.f32 %v1109, %v1115
        %1173 = vst.msk [vmem:[%s257] sm:$0xff] %vm597, %v1117
        %1174 = vst.msk [vmem:[%s257 + $0x8] sm:$0xff] %vm597, %v1118
        %1175 = vst.msk [vmem:[%s257 + $0x10] sm:$0xff] %vm597, %v1119
        %1176 = vst.msk [vmem:[%s257 + $0x18] sm:$0xff] %vm597, %v1120
        %1177 = vst.msk [vmem:[%s257 + $0x20] sm:$0xff] %vm597, %v1121
        %1178 = vst.msk [vmem:[%s257 + $0x28] sm:$0xff] %vm597, %v1122
        %1179 = vst.msk [vmem:[%s257 + $0x30] sm:$0xff] %vm597, %v1123
        %1180 = vst.msk [vmem:[%s257 + $0x38] sm:$0xff] %vm597, %v1124
        %1181 = vst.msk [vmem:[%s257 + $0x40] sm:$0xff] %vm597, %v1125
        %1182 = vst.msk [vmem:[%s257 + $0x48] sm:$0xff] %vm597, %v1126
        %1183 = vst.msk [vmem:[%s257 + $0x50] sm:$0xff] %vm597, %v1127
        %1184 = vst.msk [vmem:[%s257 + $0x58] sm:$0xff] %vm597, %v1128
        %1185 = vst.msk [vmem:[%s257 + $0x60] sm:$0xff] %vm597, %v1129
        %1186 = vst.msk [vmem:[%s257 + $0x68] sm:$0xff] %vm597, %v1130
        %1187 = vst.msk [vmem:[%s257 + $0x70] sm:$0xff] %vm597, %v1131
        %1188 = vst.msk [vmem:[%s257 + $0x78] sm:$0xff] %vm597, %v1132
        %1189 = vst.msk [vmem:[%s257 + $0x80] sm:$0xff] %vm597, %v1133
        %1190 = vst.msk [vmem:[%s257 + $0x88] sm:$0xff] %vm597, %v1134
        %1191 = vst.msk [vmem:[%s257 + $0x90] sm:$0xff] %vm597, %v1135
        %1192 = vst.msk [vmem:[%s257 + $0x98] sm:$0xff] %vm597, %v1136
        %1193 = vst.msk [vmem:[%s257 + $0xa0] sm:$0xff] %vm597, %v1137
        %1194 = vst.msk [vmem:[%s257 + $0xa8] sm:$0xff] %vm597, %v1138
        %1195 = vst.msk [vmem:[%s257 + $0xb0] sm:$0xff] %vm597, %v1139
        %1196 = vst.msk [vmem:[%s257 + $0xb8] sm:$0xff] %vm597, %v1140
        %1197 = vst.msk [vmem:[%s257 + $0xc0] sm:$0xff] %vm597, %v1141
        %1198 = vst.msk [vmem:[%s257 + $0xc8] sm:$0xff] %vm597, %v1142
        %1199 = vst.msk [vmem:[%s257 + $0xd0] sm:$0xff] %vm597, %v1143
        %1200 = vst.msk [vmem:[%s257 + $0xd8] sm:$0xff] %vm597, %v1144
        %1201 = vst.msk [vmem:[%s257 + $0xe0] sm:$0xff] %vm597, %v1145
        %1202 = vst.msk [vmem:[%s257 + $0xe8] sm:$0xff] %vm597, %v1146
        %1203 = vst.msk [vmem:[%s257 + $0xf0] sm:$0xff] %vm597, %v1147
        %1204 = vst.msk [vmem:[%s257 + $0xf8] sm:$0xff] %vm597, %v1148
        %1205 = vst.msk [vmem:[%s257 + $0x100] sm:$0xff] %vm597, %v1149
        %1206 = vst.msk [vmem:[%s257 + $0x108] sm:$0xff] %vm597, %v1150
        %1207 = vst.msk [vmem:[%s257 + $0x110] sm:$0xff] %vm597, %v1151
        %1208 = vst.msk [vmem:[%s257 + $0x118] sm:$0xff] %vm597, %v1152
        %1209 = vst.msk [vmem:[%s257 + $0x120] sm:$0xff] %vm597, %v1153
        %1210 = vst.msk [vmem:[%s257 + $0x128] sm:$0xff] %vm597, %v1154
        %1211 = vst.msk [vmem:[%s257 + $0x130] sm:$0xff] %vm597, %v1155
        %1212 = vst.msk [vmem:[%s257 + $0x138] sm:$0xff] %vm597, %v1156
        %1213 = vst.msk [vmem:[%s257 + $0x140] sm:$0xff] %vm597, %v1157
        %1214 = vst.msk [vmem:[%s257 + $0x148] sm:$0xff] %vm597, %v1158
        %1215 = vst.msk [vmem:[%s257 + $0x150] sm:$0xff] %vm597, %v1159
        %1216 = vst.msk [vmem:[%s257 + $0x158] sm:$0xff] %vm597, %v1160
        %1217 = vst.msk [vmem:[%s257 + $0x160] sm:$0xff] %vm597, %v1161
        %1218 = vst.msk [vmem:[%s257 + $0x168] sm:$0xff] %vm597, %v1162
        %1219 = vst.msk [vmem:[%s257 + $0x170] sm:$0xff] %vm597, %v1163
        %1220 = vst.msk [vmem:[%s257 + $0x178] sm:$0xff] %vm597, %v1164
        %1221 = vst.msk [vmem:[%s257 + $0x180] sm:$0xff] %vm597, %v1165
        %1222 = vst.msk [vmem:[%s257 + $0x188] sm:$0xff] %vm597, %v1166
        %1223 = vst.msk [vmem:[%s257 + $0x190] sm:$0xff] %vm597, %v1167
        %1224 = vst.msk [vmem:[%s257 + $0x198] sm:$0xff] %vm597, %v1168
        %1225 = vst.msk [vmem:[%s257 + $0x1a0] sm:$0xff] %vm597, %v1169
        %1226 = vst.msk [vmem:[%s257 + $0x1a8] sm:$0xff] %vm597, %v1170
        %1227 = vst.msk [vmem:[%s257 + $0x1b0] sm:$0xff] %vm597, %v1171
        %1228 = vst.msk [vmem:[%s257 + $0x1b8] sm:$0xff] %vm597, %v1172
      $region40: #{_mm.1} parent=31 // pred_fallthru
        _
      %s1229 = smul.u32 56, %s19
      %p1230 = scmp.lt.s32.totalorder %s1229, 391
      %s1231 = scalar_select %p1230, %s1229, 391
      %p1232 = scmp.lt.s32.totalorder %s20, 0
      %s1233 = scalar_select %p1232, %s20, 0
      %s1234 = sadd.s32 %s1233, %s1231
      %s1235 = smul.addr %s1234, 8
      %s1236 = scalar_lea.vmem %s3, %s1235
      // Predicated region
      $region41: #{_mm.1} parent=31 // pred_check
        %p1237 = pneg %p135
      $region42: #{_mm.1} parent=31 // pred_check_branch
        %1239 = sbr.rel (%p1237) target = $region44
      $region43: #{_mm.1} parent=31 // pred_region
        %s1240 = smul.u32 56, %s19
      $region44: #{_mm.1} parent=31 // pred_fallthru
        _
    $region32: #{_mm.1} parent=5 // pred_fallthru
      _
    %p1241 = scmp.le.s32.totalorder 2, %s9
    // Predicated region
    $region45: #{_mm.1} parent=5 // pred_check
      %p1242 = pneg %p1241
    $region46: #{_mm.1} parent=5 // pred_check_branch
      %1244 = sbr.rel (%p1242) target = $region48
    $region47: #{_mm.1} parent=5 // pred_region
      %s1245 = ssub.s32 %s9, 2
      // Predicated region
      $region49: #{_mm.1} parent=47 // pred_check
        %p1246 = pneg %p141
      $region50: #{_mm.1} parent=47 // pred_check_branch
        %1248 = sbr.rel (%p1246) target = $region52
      $region51: #{_mm.1} parent=47 // pred_region
        %s1249 = smul.u32 56, %s22
        %p1250 = scmp.lt.s32.totalorder %s1249, 391
        %s1251 = scalar_select %p1250, %s1249, 391
        %p1252 = scmp.lt.s32.totalorder %s23, 0
        %s1253 = scalar_select %p1252, %s23, 0
        %s1254 = sadd.s32 %s1253, %s1251
        %s1255 = smul.addr %s1254, 8
        %s1256 = scalar_lea.vmem %s3, %s1255
      $region52: #{_mm.1} parent=47 // pred_fallthru
        _
    $region48: #{_mm.1} parent=5 // pred_fallthru
      _
  $region6: #{_mm.1} parent=0 // loop_footer
    %s13 = sadd.s32 1, %s9
  $region7: #{_mm.1} parent=0 // loop_footer_branch
    %8 = sbr.rel target = $region3
  $region8: #{_mm.1} parent=0 // loop_exit
    _

</llo_original>
